<compile_context>
chip_gen: v7x
topology: tpu7x:2x2x1
jax: 0.10.0
libtpu: 0.0.40
codegen_flags: <defaults>
</compile_context>

<pallas_src>
import numpy as np
import jax
import jax.numpy as jnp
from jax.experimental import pallas as pl
from jax.experimental.pallas import tpu as pltpu

SELU_ALPHA = 1.6732632423543772
SELU_SCALE = 1.0507009873554805
LN_EPS = 1e-5
N_BLOCKS = 3              # TCN residual blocks (dilations 1, 2, 4)
N_CONVS = 2 * N_BLOCKS


def _vmem_spec():
    return pl.BlockSpec(memory_space=pltpu.MemorySpace.VMEM)


# --------------------------- fused TCN + encoder kernel ----------------------
def make_fused_kernel(B, T, C, D, H, P):
    TC = T * C
    IW = N_CONVS          # first non-conv row in w_all / v_all

    def _selu(v):
        # exp only of the clamped (non-positive) branch -> no spurious overflow.
        return SELU_SCALE * jnp.where(
            v > 0, v, SELU_ALPHA * (jnp.exp(jnp.minimum(v, 0.0)) - 1.0))

    def _ln_pair(a, b, g_a, g_b, be_a, be_b):
        # LayerNorm over concat([a, b], axis=1) without materializing the concat.
        n = a.shape[-1] + b.shape[-1]
        mean = (jnp.sum(a, axis=-1, keepdims=True)
                + jnp.sum(b, axis=-1, keepdims=True)) / n
        da, db = a - mean, b - mean
        var = (jnp.sum(da * da, axis=-1, keepdims=True)
               + jnp.sum(db * db, axis=-1, keepdims=True)) / n
        inv = jax.lax.rsqrt(var + LN_EPS)
        return da * inv * g_a + be_a, db * inv * g_b + be_b

    def _dot(a_f32, w_bf16):
        # bf16 MXU operands, f32 accumulation; surrounding VPU/EUP math stays f32.
        return jnp.dot(a_f32.astype(jnp.bfloat16), w_bf16,
                       preferred_element_type=jnp.float32)

    def kernel(x_ref, w_ref, v_ref, out_ref):
        # -------- TCN: N_BLOCKS residual blocks of 2 pre-packed causal convs --
        def block(blk, h):
            res = h

            def conv(i, a):
                o = _dot(a, w_ref[i][:TC, :TC]) + v_ref[i][:, :TC]
                return jnp.maximum(o, 0.0)            # conv -> chomp -> relu

            o = conv(2 * blk, h)
            o = conv(2 * blk + 1, o)
            # TODO(synk): identity residual is only valid because the module
            # uses num_channels=[in_dim]*3; differing widths need the
            # TemporalBlock 1x1 downsample conv.
            return jnp.maximum(o + res, 0.0)

        h = jax.lax.fori_loop(0, N_BLOCKS, block, x_ref[...], unroll=True)

        # -------- TCN head Linear(T*C -> D): slab is already lane-packed ------
        z = _dot(h, w_ref[IW][:TC, :D]) + v_ref[IW][:, :D]

        # -------- ENVEncoder (torch.cat folded into split weights / LN) -------
        w1 = w_ref[IW + 1][:D, :H]
        w2h, w2x = w_ref[IW + 2][:H, :H], w_ref[IW + 3][:D, :H]
        w3h, w3x = w_ref[IW + 4][:H, :D], w_ref[IW + 5][:D, :D]
        b1 = v_ref[IW + 1][:, :H]
        b2 = v_ref[IW + 2][:, :H]
        b3 = v_ref[IW + 3][:, :D]
        g1h, g1x = v_ref[IW + 4][:, :H], v_ref[IW + 5][:, :D]
        be1h, be1x = v_ref[IW + 6][:, :H], v_ref[IW + 7][:, :D]
        g2h, g2x = v_ref[IW + 8][:, :H], v_ref[IW + 9][:, :D]
        be2h, be2x = v_ref[IW + 10][:, :H], v_ref[IW + 11][:, :D]

        h1 = _selu(_dot(z, w1) + b1)
        a1, x1 = _ln_pair(h1, z, g1h, g1x, be1h, be1x)
        h2 = _selu(_dot(a1, w2h) + _dot(x1, w2x) + b2)
        a2, x2 = _ln_pair(h2, z, g2h, g2x, be2h, be2x)
        out_ref[...] = _dot(a2, w3h) + _dot(x2, w3x) + b3

    return kernel


# ------------------------ one-time weight pre-packing -------------------------
def pack_params(params):
    """Weight-only pre-packing (done once; no input-dependent compute hoisted)."""
    K, dils, T = params["kernel_size"], params["dilations"], params["stack_size"]
    C = params["conv_w"].shape[-1]
    D = params["wl"].shape[-1]
    H = params["b1"].shape[0]
    TC = T * C
    P = max(TC, H, D)

    def np_(a):
        return np.asarray(jax.device_get(a), np.float32)

    conv_w = np_(params["conv_w"])            # (6, K, C, C)
    conv_b = np_(params["conv_b"])            # (6, C)

    def conv_to_matrix(w_kcc, d):
        # out[b, t*C + co] = sum_{k,ci} x[b, (t-(K-1-k)*d)*C + ci] * w[k, ci, co]
        m = np.zeros((TC, TC), np.float32)
        for t in range(T):
            for k in range(K):
                tp = t - (K - 1 - k) * d
                if tp >= 0:
                    m[tp * C:(tp + 1) * C, t * C:(t + 1) * C] = w_kcc[k]
        return m

    def padm(m):
        m = np_(m)
        out = np.zeros((P, P), np.float32)
        out[:m.shape[0], :m.shape[1]] = m
        return out

    def padv(v):
        v = np_(v)
        out = np.zeros((1, P), np.float32)
        out[0, :v.shape[0]] = v
        return out

    w2, w3 = np_(params["w2"]), np_(params["w3"])
    g1, be1 = np_(params["g1"]), np_(params["be1"])
    g2, be2 = np_(params["g2"]), np_(params["be2"])

    conv_mats = [conv_to_matrix(conv_w[2 * b + j], dils[b])
                 for b in range(len(dils)) for j in range(2)]
    mats = conv_mats + [params["wl"], params["w1"],
                        w2[:H], w2[H:], w3[:H], w3[H:]]
    w_all = jnp.asarray(np.stack([padm(m) for m in mats])).astype(jnp.bfloat16)

    vecs = [np.tile(conv_b[i], T) for i in range(N_CONVS)]
    vecs += [params["bl"], params["b1"], params["b2"], params["b3"],
             g1[:H], g1[H:], be1[:H], be1[H:], g2[:H], g2[H:], be2[:H], be2[H:]]
    v_all = jnp.asarray(np.stack([padv(v) for v in vecs]))   # (18, 1, P) f32

    return {"w_all": w_all, "v_all": v_all, "T": T, "C": C, "D": D, "H": H, "P": P}


# ------------------------------- forward wrapper ------------------------------
def adaptation_module_forward(x_ntc, packed):
    B, T, C = x_ntc.shape
    assert T == packed["T"] and C == packed["C"]
    D, H, P = packed["D"], packed["H"], packed["P"]
    TC = T * C

    # NTC -> lane-packed (B, T*C) slab: a pure reshape, no transpose / copies.
    x_slab = x_ntc.reshape(B, TC).astype(jnp.float32)

    flops = 2 * B * (N_CONVS * TC * TC + TC * D + D * H + (H + D) * H + (H + D) * D)
    bytes_accessed = (x_slab.size * 4 + packed["w_all"].size * 2
                      + packed["v_all"].size * 4 + B * D * 4)

    return pl.pallas_call(
        make_fused_kernel(B, T, C, D, H, P),
        out_shape=jax.ShapeDtypeStruct((B, D), jnp.float32),
        in_specs=[_vmem_spec()] * 3,
        # D < 128 -> masked partial store; negligible at tiny B, and already a
        # single dense (B, D) slab write (keep batching calls to grow B).
        out_specs=_vmem_spec(),
        compiler_params=pltpu.CompilerParams(vmem_limit_bytes=32 * 1024 * 1024),
        cost_estimate=pl.CostEstimate(flops=flops,
                                      transcendentals=2 * B * H + 4 * B,
                                      bytes_accessed=bytes_accessed),
        # TODO(synk): at production batch sizes add a batch grid axis (x/out
        # BlockSpecs tiled over B in 8-row multiples, weights with a constant
        # index_map so they stay VMEM-resident) and
        # dimension_semantics=("parallel",) to use both v7x TensorCores and
        # pipeline the x DMA against compute within the 64 MiB VMEM budget.
    )(x_slab, packed["w_all"], packed["v_all"])


# ------------------------ deterministic parameter init -----------------------
def init_params(key, in_dim, out_dim, stack_size, kernel_size, hidden_dim):
    C, K, T, H, D = in_dim, kernel_size, stack_size, hidden_dim, out_dim
    keys = jax.random.split(key, 24)
    p = {"kernel_size": K, "dilations": (1, 2, 4), "stack_size": T}

    def xavier(k, shape, fan_in, fan_out):
        lim = (6.0 / (fan_in + fan_out)) ** 0.5
        return jax.random.uniform(k, shape, jnp.float32, -lim, lim)

    def small(k, shape):
        return jax.random.uniform(k, shape, jnp.float32, -0.1, 0.1)

    # 3 residual blocks x 2 causal convs (C -> C), raw tap layout (K, C_in, C_out).
    p["conv_w"] = jnp.stack([xavier(keys[i], (K, C, C), C * K, C * K)
                             for i in range(N_CONVS)])
    p["conv_b"] = jnp.stack([small(keys[6 + i], (C,)) for i in range(N_CONVS)])

    # TCN head: Linear(C*T, D), stored pre-flattened in (t, c)-major order.
    p["wl"] = xavier(keys[12], (T * C, D), T * C, D)
    p["bl"] = small(keys[13], (D,))

    # ENVEncoderBuilder(out_dim, out_dim, hidden_dim); concat order is [hidden, xu],
    # so rows [:H] of w2/w3 act on the hidden part, rows [H:] on the raw input.
    p["w1"], p["b1"] = xavier(keys[14], (D, H), D, H), small(keys[15], (H,))
    p["w2"], p["b2"] = xavier(keys[16], (H + D, H), H + D, H), small(keys[17], (H,))
    p["w3"], p["b3"] = xavier(keys[18], (H + D, D), H + D, D), small(keys[19], (D,))
    # Non-trivial LayerNorm affine params so the split-half packing is exercised.
    p["g1"] = 1.0 + small(keys[20], (H + D,))
    p["be1"] = small(keys[21], (H + D,))
    p["g2"] = 1.0 + small(keys[22], (H + D,))
    p["be2"] = small(keys[23], (H + D,))
    return p


# ------------------------- pure-JAX f32 reference (checking) ------------------
def reference_forward(x_ntc, params):
    B, T, C = x_ntc.shape
    K = params["kernel_size"]
    h = x_ntc.astype(jnp.float32)
    for blk, d in enumerate(params["dilations"]):
        res = h
        for j in range(2):
            w = params["conv_w"][2 * blk + j]      # (K, C, C)
            bias = params["conv_b"][2 * blk + j]   # (C,)
            pad = jnp.zeros((B, (K - 1) * d, C), jnp.float32)
            hp = jnp.concatenate([pad, h], axis=1)
            o = bias + sum(jnp.einsum("btc,cd->btd", hp[:, k * d:k * d + T, :], w[k])
                           for k in range(K))
            h = jnp.maximum(o, 0.0)
        h = jnp.maximum(h + res, 0.0)
    z = h.reshape(B, T * C) @ params["wl"] + params["bl"]

    def ln(v, g, b):
        m = jnp.mean(v, axis=-1, keepdims=True)
        var = jnp.mean((v - m) ** 2, axis=-1, keepdims=True)
        return (v - m) * jax.lax.rsqrt(var + LN_EPS) * g + b

    a = jax.nn.selu(z @ params["w1"] + params["b1"])
    a = ln(jnp.concatenate([a, z], axis=1), params["g1"], params["be1"])
    a = jax.nn.selu(a @ params["w2"] + params["b2"])
    a = ln(jnp.concatenate([a, z], axis=1), params["g2"], params["be2"])
    return a @ params["w3"] + params["b3"]


if __name__ == "__main__":
    key = jax.random.PRNGKey(0)
    kx, kp = jax.random.split(key)

    B, C, T = 2, 4, 8              # batch, in_dim (channels), stack_size (time)
    out_dim, hidden, kernel_size = 8, 32, 5

    params = init_params(kp, C, out_dim, T, kernel_size, hidden)
    packed = pack_params(params)
    # x in NTC layout; the PyTorch TCN conv path would consume the NCT view.
    x = jax.random.normal(kx, (B, T, C), jnp.float32)

    y = adaptation_module_forward(x, packed)
    jax.block_until_ready(y)
    assert y.shape == (B, out_dim) and y.dtype == jnp.float32
    assert bool(jnp.all(jnp.isfinite(y)))

    y_ref = reference_forward(x, params)
    # tolerance covers bf16 MXU-operand rounding vs. the all-f32 reference
    assert bool(jnp.allclose(y, y_ref, rtol=2e-2, atol=2e-2)), (y, y_ref)

    print("KERNEL_OK")
</pallas_src>

<mosaic_0001>
module attributes {stable_mosaic.version = 11 : i64} {
  func.func @kernel(%arg0: memref<2x32xf32, #tpu.memory_space<vmem>>, %arg1: memref<12x32x32xbf16, #tpu.memory_space<vmem>>, %arg2: memref<18x1x32xf32, #tpu.memory_space<vmem>>, %arg3: memref<2x8xf32, #tpu.memory_space<vmem>>) attributes {dimension_semantics = [], scalar_prefetch = 0 : i64, scratch_operands = 0 : i64, tpu.core_type = #tpu.core_type<tc>} {
    %c0 = arith.constant 0 : index
    %c0_0 = arith.constant 0 : index
    %0 = vector.load %arg0[%c0, %c0_0] : memref<2x32xf32, #tpu.memory_space<vmem>>, vector<2x32xf32>
    %c0_i32 = arith.constant 0 : i32
    %c2_i32 = arith.constant 2 : i32
    %1 = arith.muli %c2_i32, %c0_i32 : i32
    %2 = arith.index_cast %1 : i32 to index
    %c0_1 = arith.constant 0 : index
    %c0_2 = arith.constant 0 : index
    %3 = vector.load %arg1[%2, %c0_1, %c0_2] : memref<12x32x32xbf16, #tpu.memory_space<vmem>>, vector<1x32x32xbf16>
    %4 = vector.shape_cast %3 : vector<1x32x32xbf16> to vector<32x32xbf16>
    %5 = arith.truncf %0 : vector<2x32xf32> to vector<2x32xbf16>
    %cst = arith.constant dense<0.000000e+00> : vector<2x32xf32>
    %6 = tpu.matmul %5, %4, %cst {dimension_numbers = #tpu.dot_dimension_numbers<[1], [0], [0], [1], [0, 0, 1, 1], [], []>} : vector<2x32xbf16>, vector<32x32xbf16>, vector<2x32xf32> -> vector<2x32xf32>
    %7 = arith.index_cast %1 : i32 to index
    %c0_3 = arith.constant 0 : index
    %c0_4 = arith.constant 0 : index
    %8 = vector.load %arg2[%7, %c0_3, %c0_4] : memref<18x1x32xf32, #tpu.memory_space<vmem>>, vector<1x1x32xf32>
    %9 = vector.shape_cast %8 : vector<1x1x32xf32> to vector<1x32xf32>
    %10 = vector.broadcast %9 : vector<1x32xf32> to vector<2x32xf32>
    %11 = arith.addf %6, %10 : vector<2x32xf32>
    %cst_5 = arith.constant 0.000000e+00 : f32
    %12 = vector.broadcast %cst_5 : f32 to vector<2x32xf32>
    %13 = arith.maximumf %11, %12 : vector<2x32xf32>
    %c2_i32_6 = arith.constant 2 : i32
    %14 = arith.muli %c2_i32_6, %c0_i32 : i32
    %c1_i32 = arith.constant 1 : i32
    %15 = arith.addi %14, %c1_i32 : i32
    %16 = arith.index_cast %15 : i32 to index
    %c0_7 = arith.constant 0 : index
    %c0_8 = arith.constant 0 : index
    %17 = vector.load %arg1[%16, %c0_7, %c0_8] : memref<12x32x32xbf16, #tpu.memory_space<vmem>>, vector<1x32x32xbf16>
    %18 = vector.shape_cast %17 : vector<1x32x32xbf16> to vector<32x32xbf16>
    %19 = arith.truncf %13 : vector<2x32xf32> to vector<2x32xbf16>
    %cst_9 = arith.constant dense<0.000000e+00> : vector<2x32xf32>
    %20 = tpu.matmul %19, %18, %cst_9 {dimension_numbers = #tpu.dot_dimension_numbers<[1], [0], [0], [1], [0, 0, 1, 1], [], []>} : vector<2x32xbf16>, vector<32x32xbf16>, vector<2x32xf32> -> vector<2x32xf32>
    %21 = arith.index_cast %15 : i32 to index
    %c0_10 = arith.constant 0 : index
    %c0_11 = arith.constant 0 : index
    %22 = vector.load %arg2[%21, %c0_10, %c0_11] : memref<18x1x32xf32, #tpu.memory_space<vmem>>, vector<1x1x32xf32>
    %23 = vector.shape_cast %22 : vector<1x1x32xf32> to vector<1x32xf32>
    %24 = vector.broadcast %23 : vector<1x32xf32> to vector<2x32xf32>
    %25 = arith.addf %20, %24 : vector<2x32xf32>
    %cst_12 = arith.constant 0.000000e+00 : f32
    %26 = vector.broadcast %cst_12 : f32 to vector<2x32xf32>
    %27 = arith.maximumf %25, %26 : vector<2x32xf32>
    %28 = arith.addf %27, %0 : vector<2x32xf32>
    %cst_13 = arith.constant 0.000000e+00 : f32
    %29 = vector.broadcast %cst_13 : f32 to vector<2x32xf32>
    %30 = arith.maximumf %28, %29 : vector<2x32xf32>
    %c1_i32_14 = arith.constant 1 : i32
    %c2_i32_15 = arith.constant 2 : i32
    %31 = arith.muli %c2_i32_15, %c1_i32_14 : i32
    %32 = arith.index_cast %31 : i32 to index
    %c0_16 = arith.constant 0 : index
    %c0_17 = arith.constant 0 : index
    %33 = vector.load %arg1[%32, %c0_16, %c0_17] : memref<12x32x32xbf16, #tpu.memory_space<vmem>>, vector<1x32x32xbf16>
    %34 = vector.shape_cast %33 : vector<1x32x32xbf16> to vector<32x32xbf16>
    %35 = arith.truncf %30 : vector<2x32xf32> to vector<2x32xbf16>
    %cst_18 = arith.constant dense<0.000000e+00> : vector<2x32xf32>
    %36 = tpu.matmul %35, %34, %cst_18 {dimension_numbers = #tpu.dot_dimension_numbers<[1], [0], [0], [1], [0, 0, 1, 1], [], []>} : vector<2x32xbf16>, vector<32x32xbf16>, vector<2x32xf32> -> vector<2x32xf32>
    %37 = arith.index_cast %31 : i32 to index
    %c0_19 = arith.constant 0 : index
    %c0_20 = arith.constant 0 : index
    %38 = vector.load %arg2[%37, %c0_19, %c0_20] : memref<18x1x32xf32, #tpu.memory_space<vmem>>, vector<1x1x32xf32>
    %39 = vector.shape_cast %38 : vector<1x1x32xf32> to vector<1x32xf32>
    %40 = vector.broadcast %39 : vector<1x32xf32> to vector<2x32xf32>
    %41 = arith.addf %36, %40 : vector<2x32xf32>
    %cst_21 = arith.constant 0.000000e+00 : f32
    %42 = vector.broadcast %cst_21 : f32 to vector<2x32xf32>
    %43 = arith.maximumf %41, %42 : vector<2x32xf32>
    %c2_i32_22 = arith.constant 2 : i32
    %44 = arith.muli %c2_i32_22, %c1_i32_14 : i32
    %c1_i32_23 = arith.constant 1 : i32
    %45 = arith.addi %44, %c1_i32_23 : i32
    %46 = arith.index_cast %45 : i32 to index
    %c0_24 = arith.constant 0 : index
    %c0_25 = arith.constant 0 : index
    %47 = vector.load %arg1[%46, %c0_24, %c0_25] : memref<12x32x32xbf16, #tpu.memory_space<vmem>>, vector<1x32x32xbf16>
    %48 = vector.shape_cast %47 : vector<1x32x32xbf16> to vector<32x32xbf16>
    %49 = arith.truncf %43 : vector<2x32xf32> to vector<2x32xbf16>
    %cst_26 = arith.constant dense<0.000000e+00> : vector<2x32xf32>
    %50 = tpu.matmul %49, %48, %cst_26 {dimension_numbers = #tpu.dot_dimension_numbers<[1], [0], [0], [1], [0, 0, 1, 1], [], []>} : vector<2x32xbf16>, vector<32x32xbf16>, vector<2x32xf32> -> vector<2x32xf32>
    %51 = arith.index_cast %45 : i32 to index
    %c0_27 = arith.constant 0 : index
    %c0_28 = arith.constant 0 : index
    %52 = vector.load %arg2[%51, %c0_27, %c0_28] : memref<18x1x32xf32, #tpu.memory_space<vmem>>, vector<1x1x32xf32>
    %53 = vector.shape_cast %52 : vector<1x1x32xf32> to vector<1x32xf32>
    %54 = vector.broadcast %53 : vector<1x32xf32> to vector<2x32xf32>
    %55 = arith.addf %50, %54 : vector<2x32xf32>
    %cst_29 = arith.constant 0.000000e+00 : f32
    %56 = vector.broadcast %cst_29 : f32 to vector<2x32xf32>
    %57 = arith.maximumf %55, %56 : vector<2x32xf32>
    %58 = arith.addf %57, %30 : vector<2x32xf32>
    %cst_30 = arith.constant 0.000000e+00 : f32
    %59 = vector.broadcast %cst_30 : f32 to vector<2x32xf32>
    %60 = arith.maximumf %58, %59 : vector<2x32xf32>
    %c2_i32_31 = arith.constant 2 : i32
    %c2_i32_32 = arith.constant 2 : i32
    %61 = arith.muli %c2_i32_32, %c2_i32_31 : i32
    %62 = arith.index_cast %61 : i32 to index
    %c0_33 = arith.constant 0 : index
    %c0_34 = arith.constant 0 : index
    %63 = vector.load %arg1[%62, %c0_33, %c0_34] : memref<12x32x32xbf16, #tpu.memory_space<vmem>>, vector<1x32x32xbf16>
    %64 = vector.shape_cast %63 : vector<1x32x32xbf16> to vector<32x32xbf16>
    %65 = arith.truncf %60 : vector<2x32xf32> to vector<2x32xbf16>
    %cst_35 = arith.constant dense<0.000000e+00> : vector<2x32xf32>
    %66 = tpu.matmul %65, %64, %cst_35 {dimension_numbers = #tpu.dot_dimension_numbers<[1], [0], [0], [1], [0, 0, 1, 1], [], []>} : vector<2x32xbf16>, vector<32x32xbf16>, vector<2x32xf32> -> vector<2x32xf32>
    %67 = arith.index_cast %61 : i32 to index
    %c0_36 = arith.constant 0 : index
    %c0_37 = arith.constant 0 : index
    %68 = vector.load %arg2[%67, %c0_36, %c0_37] : memref<18x1x32xf32, #tpu.memory_space<vmem>>, vector<1x1x32xf32>
    %69 = vector.shape_cast %68 : vector<1x1x32xf32> to vector<1x32xf32>
    %70 = vector.broadcast %69 : vector<1x32xf32> to vector<2x32xf32>
    %71 = arith.addf %66, %70 : vector<2x32xf32>
    %cst_38 = arith.constant 0.000000e+00 : f32
    %72 = vector.broadcast %cst_38 : f32 to vector<2x32xf32>
    %73 = arith.maximumf %71, %72 : vector<2x32xf32>
    %c2_i32_39 = arith.constant 2 : i32
    %74 = arith.muli %c2_i32_39, %c2_i32_31 : i32
    %c1_i32_40 = arith.constant 1 : i32
    %75 = arith.addi %74, %c1_i32_40 : i32
    %76 = arith.index_cast %75 : i32 to index
    %c0_41 = arith.constant 0 : index
    %c0_42 = arith.constant 0 : index
    %77 = vector.load %arg1[%76, %c0_41, %c0_42] : memref<12x32x32xbf16, #tpu.memory_space<vmem>>, vector<1x32x32xbf16>
    %78 = vector.shape_cast %77 : vector<1x32x32xbf16> to vector<32x32xbf16>
    %79 = arith.truncf %73 : vector<2x32xf32> to vector<2x32xbf16>
    %cst_43 = arith.constant dense<0.000000e+00> : vector<2x32xf32>
    %80 = tpu.matmul %79, %78, %cst_43 {dimension_numbers = #tpu.dot_dimension_numbers<[1], [0], [0], [1], [0, 0, 1, 1], [], []>} : vector<2x32xbf16>, vector<32x32xbf16>, vector<2x32xf32> -> vector<2x32xf32>
    %81 = arith.index_cast %75 : i32 to index
    %c0_44 = arith.constant 0 : index
    %c0_45 = arith.constant 0 : index
    %82 = vector.load %arg2[%81, %c0_44, %c0_45] : memref<18x1x32xf32, #tpu.memory_space<vmem>>, vector<1x1x32xf32>
    %83 = vector.shape_cast %82 : vector<1x1x32xf32> to vector<1x32xf32>
    %84 = vector.broadcast %83 : vector<1x32xf32> to vector<2x32xf32>
    %85 = arith.addf %80, %84 : vector<2x32xf32>
    %cst_46 = arith.constant 0.000000e+00 : f32
    %86 = vector.broadcast %cst_46 : f32 to vector<2x32xf32>
    %87 = arith.maximumf %85, %86 : vector<2x32xf32>
    %88 = arith.addf %87, %60 : vector<2x32xf32>
    %cst_47 = arith.constant 0.000000e+00 : f32
    %89 = vector.broadcast %cst_47 : f32 to vector<2x32xf32>
    %90 = arith.maximumf %88, %89 : vector<2x32xf32>
    %c3_i32 = arith.constant 3 : i32
    %c6 = arith.constant 6 : index
    %c0_48 = arith.constant 0 : index
    %c0_49 = arith.constant 0 : index
    %91 = vector.load %arg1[%c6, %c0_48, %c0_49] : memref<12x32x32xbf16, #tpu.memory_space<vmem>>, vector<1x32x32xbf16>
    %92 = vector.shape_cast %91 : vector<1x32x32xbf16> to vector<32x32xbf16>
    %93 = vector.extract_strided_slice %92 {offsets = [0, 0], sizes = [32, 8], strides = [1, 1]} : vector<32x32xbf16> to vector<32x8xbf16>
    %94 = arith.truncf %90 : vector<2x32xf32> to vector<2x32xbf16>
    %cst_50 = arith.constant dense<0.000000e+00> : vector<2x8xf32>
    %95 = tpu.matmul %94, %93, %cst_50 {dimension_numbers = #tpu.dot_dimension_numbers<[1], [0], [0], [1], [0, 0, 1, 1], [], []>} : vector<2x32xbf16>, vector<32x8xbf16>, vector<2x8xf32> -> vector<2x8xf32>
    %c6_51 = arith.constant 6 : index
    %c0_52 = arith.constant 0 : index
    %c0_53 = arith.constant 0 : index
    %96 = vector.load %arg2[%c6_51, %c0_52, %c0_53] : memref<18x1x32xf32, #tpu.memory_space<vmem>>, vector<1x1x32xf32>
    %97 = vector.shape_cast %96 : vector<1x1x32xf32> to vector<1x32xf32>
    %98 = vector.extract_strided_slice %97 {offsets = [0, 0], sizes = [1, 8], strides = [1, 1]} : vector<1x32xf32> to vector<1x8xf32>
    %99 = vector.broadcast %98 : vector<1x8xf32> to vector<2x8xf32>
    %100 = arith.addf %95, %99 : vector<2x8xf32>
    %c7 = arith.constant 7 : index
    %c0_54 = arith.constant 0 : index
    %c0_55 = arith.constant 0 : index
    %101 = vector.load %arg1[%c7, %c0_54, %c0_55] : memref<12x32x32xbf16, #tpu.memory_space<vmem>>, vector<1x32x32xbf16>
    %102 = vector.shape_cast %101 : vector<1x32x32xbf16> to vector<32x32xbf16>
    %103 = vector.extract_strided_slice %102 {offsets = [0, 0], sizes = [8, 32], strides = [1, 1]} : vector<32x32xbf16> to vector<8x32xbf16>
    %c8 = arith.constant 8 : index
    %c0_56 = arith.constant 0 : index
    %c0_57 = arith.constant 0 : index
    %104 = vector.load %arg1[%c8, %c0_56, %c0_57] : memref<12x32x32xbf16, #tpu.memory_space<vmem>>, vector<1x32x32xbf16>
    %105 = vector.shape_cast %104 : vector<1x32x32xbf16> to vector<32x32xbf16>
    %c9 = arith.constant 9 : index
    %c0_58 = arith.constant 0 : index
    %c0_59 = arith.constant 0 : index
    %106 = vector.load %arg1[%c9, %c0_58, %c0_59] : memref<12x32x32xbf16, #tpu.memory_space<vmem>>, vector<1x32x32xbf16>
    %107 = vector.shape_cast %106 : vector<1x32x32xbf16> to vector<32x32xbf16>
    %108 = vector.extract_strided_slice %107 {offsets = [0, 0], sizes = [8, 32], strides = [1, 1]} : vector<32x32xbf16> to vector<8x32xbf16>
    %c10 = arith.constant 10 : index
    %c0_60 = arith.constant 0 : index
    %c0_61 = arith.constant 0 : index
    %109 = vector.load %arg1[%c10, %c0_60, %c0_61] : memref<12x32x32xbf16, #tpu.memory_space<vmem>>, vector<1x32x32xbf16>
    %110 = vector.shape_cast %109 : vector<1x32x32xbf16> to vector<32x32xbf16>
    %111 = vector.extract_strided_slice %110 {offsets = [0, 0], sizes = [32, 8], strides = [1, 1]} : vector<32x32xbf16> to vector<32x8xbf16>
    %c11 = arith.constant 11 : index
    %c0_62 = arith.constant 0 : index
    %c0_63 = arith.constant 0 : index
    %112 = vector.load %arg1[%c11, %c0_62, %c0_63] : memref<12x32x32xbf16, #tpu.memory_space<vmem>>, vector<1x32x32xbf16>
    %113 = vector.shape_cast %112 : vector<1x32x32xbf16> to vector<32x32xbf16>
    %114 = vector.extract_strided_slice %113 {offsets = [0, 0], sizes = [8, 8], strides = [1, 1]} : vector<32x32xbf16> to vector<8x8xbf16>
    %c7_64 = arith.constant 7 : index
    %c0_65 = arith.constant 0 : index
    %c0_66 = arith.constant 0 : index
    %115 = vector.load %arg2[%c7_64, %c0_65, %c0_66] : memref<18x1x32xf32, #tpu.memory_space<vmem>>, vector<1x1x32xf32>
    %116 = vector.shape_cast %115 : vector<1x1x32xf32> to vector<1x32xf32>
    %c8_67 = arith.constant 8 : index
    %c0_68 = arith.constant 0 : index
    %c0_69 = arith.constant 0 : index
    %117 = vector.load %arg2[%c8_67, %c0_68, %c0_69] : memref<18x1x32xf32, #tpu.memory_space<vmem>>, vector<1x1x32xf32>
    %118 = vector.shape_cast %117 : vector<1x1x32xf32> to vector<1x32xf32>
    %c9_70 = arith.constant 9 : index
    %c0_71 = arith.constant 0 : index
    %c0_72 = arith.constant 0 : index
    %119 = vector.load %arg2[%c9_70, %c0_71, %c0_72] : memref<18x1x32xf32, #tpu.memory_space<vmem>>, vector<1x1x32xf32>
    %120 = vector.shape_cast %119 : vector<1x1x32xf32> to vector<1x32xf32>
    %121 = vector.extract_strided_slice %120 {offsets = [0, 0], sizes = [1, 8], strides = [1, 1]} : vector<1x32xf32> to vector<1x8xf32>
    %c10_73 = arith.constant 10 : index
    %c0_74 = arith.constant 0 : index
    %c0_75 = arith.constant 0 : index
    %122 = vector.load %arg2[%c10_73, %c0_74, %c0_75] : memref<18x1x32xf32, #tpu.memory_space<vmem>>, vector<1x1x32xf32>
    %123 = vector.shape_cast %122 : vector<1x1x32xf32> to vector<1x32xf32>
    %c11_76 = arith.constant 11 : index
    %c0_77 = arith.constant 0 : index
    %c0_78 = arith.constant 0 : index
    %124 = vector.load %arg2[%c11_76, %c0_77, %c0_78] : memref<18x1x32xf32, #tpu.memory_space<vmem>>, vector<1x1x32xf32>
    %125 = vector.shape_cast %124 : vector<1x1x32xf32> to vector<1x32xf32>
    %126 = vector.extract_strided_slice %125 {offsets = [0, 0], sizes = [1, 8], strides = [1, 1]} : vector<1x32xf32> to vector<1x8xf32>
    %c12 = arith.constant 12 : index
    %c0_79 = arith.constant 0 : index
    %c0_80 = arith.constant 0 : index
    %127 = vector.load %arg2[%c12, %c0_79, %c0_80] : memref<18x1x32xf32, #tpu.memory_space<vmem>>, vector<1x1x32xf32>
    %128 = vector.shape_cast %127 : vector<1x1x32xf32> to vector<1x32xf32>
    %c13 = arith.constant 13 : index
    %c0_81 = arith.constant 0 : index
    %c0_82 = arith.constant 0 : index
    %129 = vector.load %arg2[%c13, %c0_81, %c0_82] : memref<18x1x32xf32, #tpu.memory_space<vmem>>, vector<1x1x32xf32>
    %130 = vector.shape_cast %129 : vector<1x1x32xf32> to vector<1x32xf32>
    %131 = vector.extract_strided_slice %130 {offsets = [0, 0], sizes = [1, 8], strides = [1, 1]} : vector<1x32xf32> to vector<1x8xf32>
    %c14 = arith.constant 14 : index
    %c0_83 = arith.constant 0 : index
    %c0_84 = arith.constant 0 : index
    %132 = vector.load %arg2[%c14, %c0_83, %c0_84] : memref<18x1x32xf32, #tpu.memory_space<vmem>>, vector<1x1x32xf32>
    %133 = vector.shape_cast %132 : vector<1x1x32xf32> to vector<1x32xf32>
    %c15 = arith.constant 15 : index
    %c0_85 = arith.constant 0 : index
    %c0_86 = arith.constant 0 : index
    %134 = vector.load %arg2[%c15, %c0_85, %c0_86] : memref<18x1x32xf32, #tpu.memory_space<vmem>>, vector<1x1x32xf32>
    %135 = vector.shape_cast %134 : vector<1x1x32xf32> to vector<1x32xf32>
    %136 = vector.extract_strided_slice %135 {offsets = [0, 0], sizes = [1, 8], strides = [1, 1]} : vector<1x32xf32> to vector<1x8xf32>
    %c16 = arith.constant 16 : index
    %c0_87 = arith.constant 0 : index
    %c0_88 = arith.constant 0 : index
    %137 = vector.load %arg2[%c16, %c0_87, %c0_88] : memref<18x1x32xf32, #tpu.memory_space<vmem>>, vector<1x1x32xf32>
    %138 = vector.shape_cast %137 : vector<1x1x32xf32> to vector<1x32xf32>
    %c17 = arith.constant 17 : index
    %c0_89 = arith.constant 0 : index
    %c0_90 = arith.constant 0 : index
    %139 = vector.load %arg2[%c17, %c0_89, %c0_90] : memref<18x1x32xf32, #tpu.memory_space<vmem>>, vector<1x1x32xf32>
    %140 = vector.shape_cast %139 : vector<1x1x32xf32> to vector<1x32xf32>
    %141 = vector.extract_strided_slice %140 {offsets = [0, 0], sizes = [1, 8], strides = [1, 1]} : vector<1x32xf32> to vector<1x8xf32>
    %142 = arith.truncf %100 : vector<2x8xf32> to vector<2x8xbf16>
    %cst_91 = arith.constant dense<0.000000e+00> : vector<2x32xf32>
    %143 = tpu.matmul %142, %103, %cst_91 {dimension_numbers = #tpu.dot_dimension_numbers<[1], [0], [0], [1], [0, 0, 1, 1], [], []>} : vector<2x8xbf16>, vector<8x32xbf16>, vector<2x32xf32> -> vector<2x32xf32>
    %144 = vector.broadcast %116 : vector<1x32xf32> to vector<2x32xf32>
    %145 = arith.addf %143, %144 : vector<2x32xf32>
    %cst_92 = arith.constant 0.000000e+00 : f32
    %146 = vector.broadcast %cst_92 : f32 to vector<2x32xf32>
    %147 = arith.cmpf ogt, %145, %146 : vector<2x32xf32>
    %cst_93 = arith.constant 0.000000e+00 : f32
    %148 = vector.broadcast %cst_93 : f32 to vector<2x32xf32>
    %149 = arith.minimumf %145, %148 : vector<2x32xf32>
    %150 = math.exp %149 : vector<2x32xf32>
    %cst_94 = arith.constant 1.000000e+00 : f32
    %151 = vector.broadcast %cst_94 : f32 to vector<2x32xf32>
    %152 = arith.subf %150, %151 : vector<2x32xf32>
    %cst_95 = arith.constant 1.67326319 : f32
    %153 = vector.broadcast %cst_95 : f32 to vector<2x32xf32>
    %154 = arith.mulf %153, %152 : vector<2x32xf32>
    %155 = arith.select %147, %145, %154 : vector<2x32xi1>, vector<2x32xf32>
    %cst_96 = arith.constant 1.05070102 : f32
    %156 = vector.broadcast %cst_96 : f32 to vector<2x32xf32>
    %157 = arith.mulf %156, %155 : vector<2x32xf32>
    %cst_97 = arith.constant dense<0.000000e+00> : vector<2xf32>
    %158 = vector.multi_reduction <add>, %157, %cst_97 [1] : vector<2x32xf32> to vector<2xf32>
    %159 = vector.shape_cast %158 : vector<2xf32> to vector<2x1xf32>
    %cst_98 = arith.constant dense<0.000000e+00> : vector<2xf32>
    %160 = vector.multi_reduction <add>, %100, %cst_98 [1] : vector<2x8xf32> to vector<2xf32>
    %161 = vector.shape_cast %160 : vector<2xf32> to vector<2x1xf32>
    %162 = arith.addf %159, %161 : vector<2x1xf32>
    %cst_99 = arith.constant 4.000000e+01 : f32
    %163 = vector.broadcast %cst_99 : f32 to vector<2x1xf32>
    %164 = arith.divf %162, %163 : vector<2x1xf32>
    %165 = vector.broadcast %164 : vector<2x1xf32> to vector<2x32xf32>
    %166 = arith.subf %157, %165 : vector<2x32xf32>
    %167 = vector.broadcast %164 : vector<2x1xf32> to vector<2x8xf32>
    %168 = arith.subf %100, %167 : vector<2x8xf32>
    %169 = arith.mulf %166, %166 : vector<2x32xf32>
    %cst_100 = arith.constant dense<0.000000e+00> : vector<2xf32>
    %170 = vector.multi_reduction <add>, %169, %cst_100 [1] : vector<2x32xf32> to vector<2xf32>
    %171 = vector.shape_cast %170 : vector<2xf32> to vector<2x1xf32>
    %172 = arith.mulf %168, %168 : vector<2x8xf32>
    %cst_101 = arith.constant dense<0.000000e+00> : vector<2xf32>
    %173 = vector.multi_reduction <add>, %172, %cst_101 [1] : vector<2x8xf32> to vector<2xf32>
    %174 = vector.shape_cast %173 : vector<2xf32> to vector<2x1xf32>
    %175 = arith.addf %171, %174 : vector<2x1xf32>
    %cst_102 = arith.constant 4.000000e+01 : f32
    %176 = vector.broadcast %cst_102 : f32 to vector<2x1xf32>
    %177 = arith.divf %175, %176 : vector<2x1xf32>
    %cst_103 = arith.constant 9.99999974E-6 : f32
    %178 = vector.broadcast %cst_103 : f32 to vector<2x1xf32>
    %179 = arith.addf %177, %178 : vector<2x1xf32>
    %180 = math.rsqrt %179 : vector<2x1xf32>
    %181 = vector.broadcast %180 : vector<2x1xf32> to vector<2x32xf32>
    %182 = arith.mulf %166, %181 : vector<2x32xf32>
    %183 = vector.broadcast %123 : vector<1x32xf32> to vector<2x32xf32>
    %184 = arith.mulf %182, %183 : vector<2x32xf32>
    %185 = vector.broadcast %128 : vector<1x32xf32> to vector<2x32xf32>
    %186 = arith.addf %184, %185 : vector<2x32xf32>
    %187 = vector.broadcast %180 : vector<2x1xf32> to vector<2x8xf32>
    %188 = arith.mulf %168, %187 : vector<2x8xf32>
    %189 = vector.broadcast %126 : vector<1x8xf32> to vector<2x8xf32>
    %190 = arith.mulf %188, %189 : vector<2x8xf32>
    %191 = vector.broadcast %131 : vector<1x8xf32> to vector<2x8xf32>
    %192 = arith.addf %190, %191 : vector<2x8xf32>
    %193 = arith.truncf %186 : vector<2x32xf32> to vector<2x32xbf16>
    %cst_104 = arith.constant dense<0.000000e+00> : vector<2x32xf32>
    %194 = tpu.matmul %193, %105, %cst_104 {dimension_numbers = #tpu.dot_dimension_numbers<[1], [0], [0], [1], [0, 0, 1, 1], [], []>} : vector<2x32xbf16>, vector<32x32xbf16>, vector<2x32xf32> -> vector<2x32xf32>
    %195 = arith.truncf %192 : vector<2x8xf32> to vector<2x8xbf16>
    %cst_105 = arith.constant dense<0.000000e+00> : vector<2x32xf32>
    %196 = tpu.matmul %195, %108, %cst_105 {dimension_numbers = #tpu.dot_dimension_numbers<[1], [0], [0], [1], [0, 0, 1, 1], [], []>} : vector<2x8xbf16>, vector<8x32xbf16>, vector<2x32xf32> -> vector<2x32xf32>
    %197 = arith.addf %194, %196 : vector<2x32xf32>
    %198 = vector.broadcast %118 : vector<1x32xf32> to vector<2x32xf32>
    %199 = arith.addf %197, %198 : vector<2x32xf32>
    %cst_106 = arith.constant 0.000000e+00 : f32
    %200 = vector.broadcast %cst_106 : f32 to vector<2x32xf32>
    %201 = arith.cmpf ogt, %199, %200 : vector<2x32xf32>
    %cst_107 = arith.constant 0.000000e+00 : f32
    %202 = vector.broadcast %cst_107 : f32 to vector<2x32xf32>
    %203 = arith.minimumf %199, %202 : vector<2x32xf32>
    %204 = math.exp %203 : vector<2x32xf32>
    %cst_108 = arith.constant 1.000000e+00 : f32
    %205 = vector.broadcast %cst_108 : f32 to vector<2x32xf32>
    %206 = arith.subf %204, %205 : vector<2x32xf32>
    %cst_109 = arith.constant 1.67326319 : f32
    %207 = vector.broadcast %cst_109 : f32 to vector<2x32xf32>
    %208 = arith.mulf %207, %206 : vector<2x32xf32>
    %209 = arith.select %201, %199, %208 : vector<2x32xi1>, vector<2x32xf32>
    %cst_110 = arith.constant 1.05070102 : f32
    %210 = vector.broadcast %cst_110 : f32 to vector<2x32xf32>
    %211 = arith.mulf %210, %209 : vector<2x32xf32>
    %cst_111 = arith.constant dense<0.000000e+00> : vector<2xf32>
    %212 = vector.multi_reduction <add>, %211, %cst_111 [1] : vector<2x32xf32> to vector<2xf32>
    %213 = vector.shape_cast %212 : vector<2xf32> to vector<2x1xf32>
    %cst_112 = arith.constant dense<0.000000e+00> : vector<2xf32>
    %214 = vector.multi_reduction <add>, %100, %cst_112 [1] : vector<2x8xf32> to vector<2xf32>
    %215 = vector.shape_cast %214 : vector<2xf32> to vector<2x1xf32>
    %216 = arith.addf %213, %215 : vector<2x1xf32>
    %cst_113 = arith.constant 4.000000e+01 : f32
    %217 = vector.broadcast %cst_113 : f32 to vector<2x1xf32>
    %218 = arith.divf %216, %217 : vector<2x1xf32>
    %219 = vector.broadcast %218 : vector<2x1xf32> to vector<2x32xf32>
    %220 = arith.subf %211, %219 : vector<2x32xf32>
    %221 = vector.broadcast %218 : vector<2x1xf32> to vector<2x8xf32>
    %222 = arith.subf %100, %221 : vector<2x8xf32>
    %223 = arith.mulf %220, %220 : vector<2x32xf32>
    %cst_114 = arith.constant dense<0.000000e+00> : vector<2xf32>
    %224 = vector.multi_reduction <add>, %223, %cst_114 [1] : vector<2x32xf32> to vector<2xf32>
    %225 = vector.shape_cast %224 : vector<2xf32> to vector<2x1xf32>
    %226 = arith.mulf %222, %222 : vector<2x8xf32>
    %cst_115 = arith.constant dense<0.000000e+00> : vector<2xf32>
    %227 = vector.multi_reduction <add>, %226, %cst_115 [1] : vector<2x8xf32> to vector<2xf32>
    %228 = vector.shape_cast %227 : vector<2xf32> to vector<2x1xf32>
    %229 = arith.addf %225, %228 : vector<2x1xf32>
    %cst_116 = arith.constant 4.000000e+01 : f32
    %230 = vector.broadcast %cst_116 : f32 to vector<2x1xf32>
    %231 = arith.divf %229, %230 : vector<2x1xf32>
    %cst_117 = arith.constant 9.99999974E-6 : f32
    %232 = vector.broadcast %cst_117 : f32 to vector<2x1xf32>
    %233 = arith.addf %231, %232 : vector<2x1xf32>
    %234 = math.rsqrt %233 : vector<2x1xf32>
    %235 = vector.broadcast %234 : vector<2x1xf32> to vector<2x32xf32>
    %236 = arith.mulf %220, %235 : vector<2x32xf32>
    %237 = vector.broadcast %133 : vector<1x32xf32> to vector<2x32xf32>
    %238 = arith.mulf %236, %237 : vector<2x32xf32>
    %239 = vector.broadcast %138 : vector<1x32xf32> to vector<2x32xf32>
    %240 = arith.addf %238, %239 : vector<2x32xf32>
    %241 = vector.broadcast %234 : vector<2x1xf32> to vector<2x8xf32>
    %242 = arith.mulf %222, %241 : vector<2x8xf32>
    %243 = vector.broadcast %136 : vector<1x8xf32> to vector<2x8xf32>
    %244 = arith.mulf %242, %243 : vector<2x8xf32>
    %245 = vector.broadcast %141 : vector<1x8xf32> to vector<2x8xf32>
    %246 = arith.addf %244, %245 : vector<2x8xf32>
    %247 = arith.truncf %240 : vector<2x32xf32> to vector<2x32xbf16>
    %cst_118 = arith.constant dense<0.000000e+00> : vector<2x8xf32>
    %248 = tpu.matmul %247, %111, %cst_118 {dimension_numbers = #tpu.dot_dimension_numbers<[1], [0], [0], [1], [0, 0, 1, 1], [], []>} : vector<2x32xbf16>, vector<32x8xbf16>, vector<2x8xf32> -> vector<2x8xf32>
    %249 = arith.truncf %246 : vector<2x8xf32> to vector<2x8xbf16>
    %cst_119 = arith.constant dense<0.000000e+00> : vector<2x8xf32>
    %250 = tpu.matmul %249, %114, %cst_119 {dimension_numbers = #tpu.dot_dimension_numbers<[1], [0], [0], [1], [0, 0, 1, 1], [], []>} : vector<2x8xbf16>, vector<8x8xbf16>, vector<2x8xf32> -> vector<2x8xf32>
    %251 = arith.addf %248, %250 : vector<2x8xf32>
    %252 = vector.broadcast %121 : vector<1x8xf32> to vector<2x8xf32>
    %253 = arith.addf %251, %252 : vector<2x8xf32>
    %c0_120 = arith.constant 0 : index
    %c0_121 = arith.constant 0 : index
    %254 = vector.load %arg3[%c0_120, %c0_121] : memref<2x8xf32, #tpu.memory_space<vmem>>, vector<2x8xf32>
    tpu.vector_store %arg3[%c0_120, %c0_121], %253 {strides = array<i32>} : memref<2x8xf32, #tpu.memory_space<vmem>>, vector<2x8xf32>,
    return
  }
}

</mosaic_0001>

<llo_original>
// kernel: tpu_custom_call.1
$region0: #{tpu_custom_call.1}
  #allocation0 [shape = 'u32[]', space=smem, size = 0x4, offset = 0x4, fixed_abs, tag = 'smem constant byte address 0x4 - core index']
  #allocation1 [shape = 'u32[144,128]{1,0:T(1,128)}', space=vmem, size = 0x12000, scoped, tag = 'internal scratch']
  %s0 = inlined_call_operand.hbm [shape: f32[2,32], index: 0, kind: input, shape index: {}]
  %s1 = inlined_call_operand.hbm [shape: bf16[12,32,32], index: 1, kind: input, shape index: {}]
  %s2 = inlined_call_operand.hbm [shape: f32[18,1,32], index: 2, kind: input, shape index: {}]
  %s3 = inlined_call_operand.hbm [shape: f32[2,8], index: 3, kind: output, shape index: {}]
  %s4 = sld [smem:[#allocation0]]
  $region34: #{tpu_custom_call.1} parent=0
    _
  %s6 = ssub.s32 1, %s4
  %s7 = scalar_select 0, %s6, %s4
  $region1: #{tpu_custom_call.1} parent=0
    #allocation2 [shape = 'u8[1024]{0}', space=vmem, size = 0x400, scoped, tag = 'input window, operand 0, single buffered']
    #allocation3 [shape = 's32[1]{0}', space=sflag, size = 0x4, scoped, tag = 'scoped memory for tpu_custom_call.1']
    #allocation4 [shape = 's32[1]{0}', space=sflag, size = 0x4, scoped, tag = 'scoped memory for tpu_custom_call.1']
    #allocation5 [shape = 'u8[98304]{0}', space=vmem, size = 0x18000, scoped, tag = 'input window, operand 1, single buffered']
    #allocation6 [shape = 's32[1]{0}', space=sflag, size = 0x4, scoped, tag = 'scoped memory for tpu_custom_call.1']
    #allocation7 [shape = 'u8[9216]{0}', space=vmem, size = 0x2400, scoped, tag = 'input window, operand 2, single buffered']
    #allocation8 [shape = 'u8[1024]{0}', space=vmem, size = 0x400, scoped, tag = 'output window, operand 0, single buffered']
    %8 = vsyncpa [#allocation3], 0
    %9 = vsyncpa [#allocation6], 0
    %10 = vsyncpa [#allocation4], 0
    // Predicated region
    $region2: #{tpu_custom_call.1} parent=1 // pred_check
      _
    $region3: #{tpu_custom_call.1} parent=1 // pred_check_branch
      %12 = sbr.rel (0) target = $region5
    $region4: #{tpu_custom_call.1} parent=1 // pred_region
      %s14 = ssub.s32 32, 32
      %15 = vsyncadd [#allocation3], %s14
      %s17 = sshll.u32 [#allocation2], 4
      %s18 = int_to_ptr.vmem [resolvable:$true] %s17
      %20 = dma.hbm_to_vmem [thread:$0]  %s0, 32, %s18, [#allocation3]
    $region5: #{tpu_custom_call.1} parent=1 // pred_fallthru
      _
    // Predicated region
    $region6: #{tpu_custom_call.1} parent=1 // pred_check
      _
    $region7: #{tpu_custom_call.1} parent=1 // pred_check_branch
      %22 = sbr.rel (0) target = $region9
    $region8: #{tpu_custom_call.1} parent=1 // pred_region
      %s24 = ssub.s32 3072, 3072
      %25 = vsyncadd [#allocation6], %s24
      %s26 = sshll.u32 [#allocation5], 4
      %s27 = int_to_ptr.vmem [resolvable:$true] %s26
      %32 = dma.hbm_to_vmem [thread:$0]  %s1, 3072, %s27, [#allocation6], 64, 64, 4
    $region9: #{tpu_custom_call.1} parent=1 // pred_fallthru
      _
    // Predicated region
    $region10: #{tpu_custom_call.1} parent=1 // pred_check
      _
    $region11: #{tpu_custom_call.1} parent=1 // pred_check_branch
      %34 = sbr.rel (0) target = $region13
    $region12: #{tpu_custom_call.1} parent=1 // pred_region
      %s36 = ssub.s32 288, 288
      %37 = vsyncadd [#allocation6], %s36
      %s38 = sshll.u32 [#allocation7], 4
      %s39 = int_to_ptr.vmem [resolvable:$true] %s38
      %44 = dma.hbm_to_vmem [thread:$0]  %s2, 288, %s39, [#allocation6], 16, 16, 1
    $region13: #{tpu_custom_call.1} parent=1 // pred_fallthru
      _
    // Predicated region
    $region14: #{tpu_custom_call.1} parent=1 // pred_check
      _
    $region15: #{tpu_custom_call.1} parent=1 // pred_check_branch
      %46 = sbr.rel (0) target = $region17
    $region16: #{tpu_custom_call.1} parent=1 // pred_region
      %47 = dma.done [#allocation3], 32
    $region17: #{tpu_custom_call.1} parent=1 // pred_fallthru
      _
    // Predicated region
    $region18: #{tpu_custom_call.1} parent=1 // pred_check
      _
    $region19: #{tpu_custom_call.1} parent=1 // pred_check_branch
      %49 = sbr.rel (0) target = $region21
    $region20: #{tpu_custom_call.1} parent=1 // pred_region
      %50 = dma.done [#allocation6], 3072
    $region21: #{tpu_custom_call.1} parent=1 // pred_fallthru
      _
    // Predicated region
    $region22: #{tpu_custom_call.1} parent=1 // pred_check
      _
    $region23: #{tpu_custom_call.1} parent=1 // pred_check_branch
      %52 = sbr.rel (0) target = $region25
    $region24: #{tpu_custom_call.1} parent=1 // pred_region
      %53 = dma.done [#allocation6], 288
    $region25: #{tpu_custom_call.1} parent=1 // pred_fallthru
      _
    %v55 = vld [vmem:[#allocation2] sm:$0x3]
    %v56 = vld [vmem:[#allocation5] sm:$0xf]
    %v57 = vld [vmem:[#allocation5 + $0x4] sm:$0xf]
    %v58 = vld [vmem:[#allocation5 + $0x8] sm:$0xf]
    %v59 = vld [vmem:[#allocation5 + $0xc] sm:$0xf]
    %v60 = vpack.c.bf16 %v55, %v55
    %v61 = vld [vmem:[#allocation7] sm:$0x1]
    %v63 = vlaneseq
    %v64 = vshrl.u32 %v63, 7
    %v65 = vsub.s32 0, %v64
    %v66 = vrot.slane %v61, %v65
    %v72 = vunpack.c.l.b16 %v56
    %v73 = vunpack.c.l.b16 %v57
    %v74 = vunpack.c.l.b16 %v58
    %v75 = vunpack.c.l.b16 %v59
    %v76 = vpack.c.b16 %v73, %v72
    %v77 = vpack.c.b16 %v75, %v74
    %vm80 = vcmask 261120
    %v82 = vsel %vm80, %v60, 0
    %84 = vmatprep.subr.bf16.mxu0 0
    %85 = vmatpush1.bf16.msra.mxu0 %v76
    %86 = vmatprep.subr.bf16.mxu0 0
    %87 = vmatpush1.bf16.msra.mxu0 %v77
    %88 = vmatprep.subr.bf16.mxu0 0
    %89 = vmatpush1.bf16.msra.mxu0 0
    %90 = vmatprep.subr.bf16.mxu0 0
    %91 = vmatpush1.bf16.msra.mxu0 0
    %92 = vmatprep.subr.bf16.mxu0 0
    %93 = vmatpush1.bf16.msra.mxu0 0
    %94 = vmatprep.subr.bf16.mxu0 0
    %95 = vmatpush1.bf16.msra.mxu0 0
    %96 = vmatprep.subr.bf16.mxu0 0
    %97 = vmatpush1.bf16.msra.mxu0 0
    %98 = vmatprep.subr.bf16.mxu0 0
    %99 = vmatpush1.bf16.msra.mxu0 0
    %100 = vmatprep.subr.bf16.mxu0 0
    %101 = vmatpush1.bf16.msra.mxu0 0
    %102 = vmatprep.subr.bf16.mxu0 0
    %103 = vmatpush1.bf16.msra.mxu0 0
    %104 = vmatprep.subr.bf16.mxu0 0
    %105 = vmatpush1.bf16.msra.mxu0 0
    %106 = vmatprep.subr.bf16.mxu0 0
    %107 = vmatpush1.bf16.msra.mxu0 0
    %108 = vmatprep.subr.bf16.mxu0 0
    %109 = vmatpush1.bf16.msra.mxu0 0
    %110 = vmatprep.subr.bf16.mxu0 0
    %111 = vmatpush1.bf16.msra.mxu0 0
    %112 = vmatprep.subr.bf16.mxu0 0
    %113 = vmatpush1.bf16.msra.mxu0 0
    %114 = vmatprep.subr.bf16.mxu0 0
    %115 = vmatpush1.bf16.msra.mxu0 0
    %116 = vmatprep.mubr.bf16.mxu0 0
    %117 = vmatmul.mubr.bf16.gmra.mrb[0].mxu0 %v82
    %v118 = vpop.f32.mrb[0].mxu0
    %v119 = vadd.f32 %v66, %v118
    %v120 = vpop.f32.mrb[0].mxu0
    %v121 = vpop.f32.mrb[0].mxu0
    %v122 = vpop.f32.mrb[0].mxu0
    %123 = vdwg.mxu0
    %v124 = vmax.f32 %v119, 0.0
    %s125 = scalar_lea.vmem [#allocation5], 16
    %v126 = vld [vmem:[%s125] sm:$0xf]
    %v127 = vld [vmem:[%s125 + $0x4] sm:$0xf]
    %v128 = vld [vmem:[%s125 + $0x8] sm:$0xf]
    %v129 = vld [vmem:[%s125 + $0xc] sm:$0xf]
    %v130 = vpack.c.bf16 %v124, %v124
    %s131 = scalar_lea.vmem [#allocation7], 1
    %v132 = vld [vmem:[%s131] sm:$0x1]
    %v134 = vlaneseq
    %v135 = vshrl.u32 %v134, 7
    %v136 = vsub.s32 0, %v135
    %v137 = vrot.slane %v132, %v136
    %v143 = vunpack.c.l.b16 %v126
    %v144 = vunpack.c.l.b16 %v127
    %v145 = vunpack.c.l.b16 %v128
    %v146 = vunpack.c.l.b16 %v129
    %v147 = vpack.c.b16 %v144, %v143
    %v148 = vpack.c.b16 %v146, %v145
    %v152 = vsel %vm80, %v130, 0
    %154 = vmatprep.subr.bf16.mxu0 0
    %155 = vmatpush1.bf16.msra.mxu0 %v147
    %156 = vmatprep.subr.bf16.mxu0 0
    %157 = vmatpush1.bf16.msra.mxu0 %v148
    %158 = vmatprep.subr.bf16.mxu0 0
    %159 = vmatpush1.bf16.msra.mxu0 0
    %160 = vmatprep.subr.bf16.mxu0 0
    %161 = vmatpush1.bf16.msra.mxu0 0
    %162 = vmatprep.subr.bf16.mxu0 0
    %163 = vmatpush1.bf16.msra.mxu0 0
    %164 = vmatprep.subr.bf16.mxu0 0
    %165 = vmatpush1.bf16.msra.mxu0 0
    %166 = vmatprep.subr.bf16.mxu0 0
    %167 = vmatpush1.bf16.msra.mxu0 0
    %168 = vmatprep.subr.bf16.mxu0 0
    %169 = vmatpush1.bf16.msra.mxu0 0
    %170 = vmatprep.subr.bf16.mxu0 0
    %171 = vmatpush1.bf16.msra.mxu0 0
    %172 = vmatprep.subr.bf16.mxu0 0
    %173 = vmatpush1.bf16.msra.mxu0 0
    %174 = vmatprep.subr.bf16.mxu0 0
    %175 = vmatpush1.bf16.msra.mxu0 0
    %176 = vmatprep.subr.bf16.mxu0 0
    %177 = vmatpush1.bf16.msra.mxu0 0
    %178 = vmatprep.subr.bf16.mxu0 0
    %179 = vmatpush1.bf16.msra.mxu0 0
    %180 = vmatprep.subr.bf16.mxu0 0
    %181 = vmatpush1.bf16.msra.mxu0 0
    %182 = vmatprep.subr.bf16.mxu0 0
    %183 = vmatpush1.bf16.msra.mxu0 0
    %184 = vmatprep.subr.bf16.mxu0 0
    %185 = vmatpush1.bf16.msra.mxu0 0
    %186 = vmatprep.mubr.bf16.mxu0 0
    %187 = vmatmul.mubr.bf16.gmra.mrb[0].mxu0 %v152
    %v188 = vpop.f32.mrb[0].mxu0
    %v189 = vadd.f32 %v137, %v188
    %v190 = vpop.f32.mrb[0].mxu0
    %v191 = vpop.f32.mrb[0].mxu0
    %v192 = vpop.f32.mrb[0].mxu0
    %193 = vdwg.mxu0
    %v194 = vmax.f32 %v189, 0.0
    %v195 = vadd.f32 %v194, %v55
    %v196 = vmax.f32 %v195, 0.0
    %s197 = scalar_lea.vmem [#allocation5], 32
    %v198 = vld [vmem:[%s197] sm:$0xf]
    %v199 = vld [vmem:[%s197 + $0x4] sm:$0xf]
    %v200 = vld [vmem:[%s197 + $0x8] sm:$0xf]
    %v201 = vld [vmem:[%s197 + $0xc] sm:$0xf]
    %v202 = vpack.c.bf16 %v196, %v196
    %s203 = scalar_lea.vmem [#allocation7], 2
    %v204 = vld [vmem:[%s203] sm:$0x1]
    %v206 = vlaneseq
    %v207 = vshrl.u32 %v206, 7
    %v208 = vsub.s32 0, %v207
    %v209 = vrot.slane %v204, %v208
    %v215 = vunpack.c.l.b16 %v198
    %v216 = vunpack.c.l.b16 %v199
    %v217 = vunpack.c.l.b16 %v200
    %v218 = vunpack.c.l.b16 %v201
    %v219 = vpack.c.b16 %v216, %v215
    %v220 = vpack.c.b16 %v218, %v217
    %v224 = vsel %vm80, %v202, 0
    %226 = vmatprep.subr.bf16.mxu0 0
    %227 = vmatpush1.bf16.msra.mxu0 %v219
    %228 = vmatprep.subr.bf16.mxu0 0
    %229 = vmatpush1.bf16.msra.mxu0 %v220
    %230 = vmatprep.subr.bf16.mxu0 0
    %231 = vmatpush1.bf16.msra.mxu0 0
    %232 = vmatprep.subr.bf16.mxu0 0
    %233 = vmatpush1.bf16.msra.mxu0 0
    %234 = vmatprep.subr.bf16.mxu0 0
    %235 = vmatpush1.bf16.msra.mxu0 0
    %236 = vmatprep.subr.bf16.mxu0 0
    %237 = vmatpush1.bf16.msra.mxu0 0
    %238 = vmatprep.subr.bf16.mxu0 0
    %239 = vmatpush1.bf16.msra.mxu0 0
    %240 = vmatprep.subr.bf16.mxu0 0
    %241 = vmatpush1.bf16.msra.mxu0 0
    %242 = vmatprep.subr.bf16.mxu0 0
    %243 = vmatpush1.bf16.msra.mxu0 0
    %244 = vmatprep.subr.bf16.mxu0 0
    %245 = vmatpush1.bf16.msra.mxu0 0
    %246 = vmatprep.subr.bf16.mxu0 0
    %247 = vmatpush1.bf16.msra.mxu0 0
    %248 = vmatprep.subr.bf16.mxu0 0
    %249 = vmatpush1.bf16.msra.mxu0 0
    %250 = vmatprep.subr.bf16.mxu0 0
    %251 = vmatpush1.bf16.msra.mxu0 0
    %252 = vmatprep.subr.bf16.mxu0 0
    %253 = vmatpush1.bf16.msra.mxu0 0
    %254 = vmatprep.subr.bf16.mxu0 0
    %255 = vmatpush1.bf16.msra.mxu0 0
    %256 = vmatprep.subr.bf16.mxu0 0
    %257 = vmatpush1.bf16.msra.mxu0 0
    %258 = vmatprep.mubr.bf16.mxu0 0
    %259 = vmatmul.mubr.bf16.gmra.mrb[0].mxu0 %v224
    %v260 = vpop.f32.mrb[0].mxu0
    %v261 = vadd.f32 %v209, %v260
    %v262 = vpop.f32.mrb[0].mxu0
    %v263 = vpop.f32.mrb[0].mxu0
    %v264 = vpop.f32.mrb[0].mxu0
    %265 = vdwg.mxu0
    %v266 = vmax.f32 %v261, 0.0
    %s267 = scalar_lea.vmem [#allocation5], 48
    %v268 = vld [vmem:[%s267] sm:$0xf]
    %v269 = vld [vmem:[%s267 + $0x4] sm:$0xf]
    %v270 = vld [vmem:[%s267 + $0x8] sm:$0xf]
    %v271 = vld [vmem:[%s267 + $0xc] sm:$0xf]
    %v272 = vpack.c.bf16 %v266, %v266
    %s273 = scalar_lea.vmem [#allocation7], 3
    %v274 = vld [vmem:[%s273] sm:$0x1]
    %v276 = vlaneseq
    %v277 = vshrl.u32 %v276, 7
    %v278 = vsub.s32 0, %v277
    %v279 = vrot.slane %v274, %v278
    %v285 = vunpack.c.l.b16 %v268
    %v286 = vunpack.c.l.b16 %v269
    %v287 = vunpack.c.l.b16 %v270
    %v288 = vunpack.c.l.b16 %v271
    %v289 = vpack.c.b16 %v286, %v285
    %v290 = vpack.c.b16 %v288, %v287
    %v294 = vsel %vm80, %v272, 0
    %296 = vmatprep.subr.bf16.mxu0 0
    %297 = vmatpush1.bf16.msra.mxu0 %v289
    %298 = vmatprep.subr.bf16.mxu0 0
    %299 = vmatpush1.bf16.msra.mxu0 %v290
    %300 = vmatprep.subr.bf16.mxu0 0
    %301 = vmatpush1.bf16.msra.mxu0 0
    %302 = vmatprep.subr.bf16.mxu0 0
    %303 = vmatpush1.bf16.msra.mxu0 0
    %304 = vmatprep.subr.bf16.mxu0 0
    %305 = vmatpush1.bf16.msra.mxu0 0
    %306 = vmatprep.subr.bf16.mxu0 0
    %307 = vmatpush1.bf16.msra.mxu0 0
    %308 = vmatprep.subr.bf16.mxu0 0
    %309 = vmatpush1.bf16.msra.mxu0 0
    %310 = vmatprep.subr.bf16.mxu0 0
    %311 = vmatpush1.bf16.msra.mxu0 0
    %312 = vmatprep.subr.bf16.mxu0 0
    %313 = vmatpush1.bf16.msra.mxu0 0
    %314 = vmatprep.subr.bf16.mxu0 0
    %315 = vmatpush1.bf16.msra.mxu0 0
    %316 = vmatprep.subr.bf16.mxu0 0
    %317 = vmatpush1.bf16.msra.mxu0 0
    %318 = vmatprep.subr.bf16.mxu0 0
    %319 = vmatpush1.bf16.msra.mxu0 0
    %320 = vmatprep.subr.bf16.mxu0 0
    %321 = vmatpush1.bf16.msra.mxu0 0
    %322 = vmatprep.subr.bf16.mxu0 0
    %323 = vmatpush1.bf16.msra.mxu0 0
    %324 = vmatprep.subr.bf16.mxu0 0
    %325 = vmatpush1.bf16.msra.mxu0 0
    %326 = vmatprep.subr.bf16.mxu0 0
    %327 = vmatpush1.bf16.msra.mxu0 0
    %328 = vmatprep.mubr.bf16.mxu0 0
    %329 = vmatmul.mubr.bf16.gmra.mrb[0].mxu0 %v294
    %v330 = vpop.f32.mrb[0].mxu0
    %v331 = vadd.f32 %v279, %v330
    %v332 = vpop.f32.mrb[0].mxu0
    %v333 = vpop.f32.mrb[0].mxu0
    %v334 = vpop.f32.mrb[0].mxu0
    %335 = vdwg.mxu0
    %v336 = vmax.f32 %v331, 0.0
    %v337 = vadd.f32 %v336, %v196
    %v338 = vmax.f32 %v337, 0.0
    %s339 = scalar_lea.vmem [#allocation5], 64
    %v340 = vld [vmem:[%s339] sm:$0xf]
    %v341 = vld [vmem:[%s339 + $0x4] sm:$0xf]
    %v342 = vld [vmem:[%s339 + $0x8] sm:$0xf]
    %v343 = vld [vmem:[%s339 + $0xc] sm:$0xf]
    %v344 = vpack.c.bf16 %v338, %v338
    %s345 = scalar_lea.vmem [#allocation7], 4
    %v346 = vld [vmem:[%s345] sm:$0x1]
    %v348 = vlaneseq
    %v349 = vshrl.u32 %v348, 7
    %v350 = vsub.s32 0, %v349
    %v351 = vrot.slane %v346, %v350
    %v357 = vunpack.c.l.b16 %v340
    %v358 = vunpack.c.l.b16 %v341
    %v359 = vunpack.c.l.b16 %v342
    %v360 = vunpack.c.l.b16 %v343
    %v361 = vpack.c.b16 %v358, %v357
    %v362 = vpack.c.b16 %v360, %v359
    %v366 = vsel %vm80, %v344, 0
    %368 = vmatprep.subr.bf16.mxu0 0
    %369 = vmatpush1.bf16.msra.mxu0 %v361
    %370 = vmatprep.subr.bf16.mxu0 0
    %371 = vmatpush1.bf16.msra.mxu0 %v362
    %372 = vmatprep.subr.bf16.mxu0 0
    %373 = vmatpush1.bf16.msra.mxu0 0
    %374 = vmatprep.subr.bf16.mxu0 0
    %375 = vmatpush1.bf16.msra.mxu0 0
    %376 = vmatprep.subr.bf16.mxu0 0
    %377 = vmatpush1.bf16.msra.mxu0 0
    %378 = vmatprep.subr.bf16.mxu0 0
    %379 = vmatpush1.bf16.msra.mxu0 0
    %380 = vmatprep.subr.bf16.mxu0 0
    %381 = vmatpush1.bf16.msra.mxu0 0
    %382 = vmatprep.subr.bf16.mxu0 0
    %383 = vmatpush1.bf16.msra.mxu0 0
    %384 = vmatprep.subr.bf16.mxu0 0
    %385 = vmatpush1.bf16.msra.mxu0 0
    %386 = vmatprep.subr.bf16.mxu0 0
    %387 = vmatpush1.bf16.msra.mxu0 0
    %388 = vmatprep.subr.bf16.mxu0 0
    %389 = vmatpush1.bf16.msra.mxu0 0
    %390 = vmatprep.subr.bf16.mxu0 0
    %391 = vmatpush1.bf16.msra.mxu0 0
    %392 = vmatprep.subr.bf16.mxu0 0
    %393 = vmatpush1.bf16.msra.mxu0 0
    %394 = vmatprep.subr.bf16.mxu0 0
    %395 = vmatpush1.bf16.msra.mxu0 0
    %396 = vmatprep.subr.bf16.mxu0 0
    %397 = vmatpush1.bf16.msra.mxu0 0
    %398 = vmatprep.subr.bf16.mxu0 0
    %399 = vmatpush1.bf16.msra.mxu0 0
    %400 = vmatprep.mubr.bf16.mxu0 0
    %401 = vmatmul.mubr.bf16.gmra.mrb[0].mxu0 %v366
    %v402 = vpop.f32.mrb[0].mxu0
    %v403 = vadd.f32 %v351, %v402
    %v404 = vpop.f32.mrb[0].mxu0
    %v405 = vpop.f32.mrb[0].mxu0
    %v406 = vpop.f32.mrb[0].mxu0
    %407 = vdwg.mxu0
    %v408 = vmax.f32 %v403, 0.0
    %s409 = scalar_lea.vmem [#allocation5], 80
    %v410 = vld [vmem:[%s409] sm:$0xf]
    %v411 = vld [vmem:[%s409 + $0x4] sm:$0xf]
    %v412 = vld [vmem:[%s409 + $0x8] sm:$0xf]
    %v413 = vld [vmem:[%s409 + $0xc] sm:$0xf]
    %v414 = vpack.c.bf16 %v408, %v408
    %s415 = scalar_lea.vmem [#allocation7], 5
    %v416 = vld [vmem:[%s415] sm:$0x1]
    %v418 = vlaneseq
    %v419 = vshrl.u32 %v418, 7
    %v420 = vsub.s32 0, %v419
    %v421 = vrot.slane %v416, %v420
    %v427 = vunpack.c.l.b16 %v410
    %v428 = vunpack.c.l.b16 %v411
    %v429 = vunpack.c.l.b16 %v412
    %v430 = vunpack.c.l.b16 %v413
    %v431 = vpack.c.b16 %v428, %v427
    %v432 = vpack.c.b16 %v430, %v429
    %v436 = vsel %vm80, %v414, 0
    %438 = vmatprep.subr.bf16.mxu0 0
    %439 = vmatpush1.bf16.msra.mxu0 %v431
    %440 = vmatprep.subr.bf16.mxu0 0
    %441 = vmatpush1.bf16.msra.mxu0 %v432
    %442 = vmatprep.subr.bf16.mxu0 0
    %443 = vmatpush1.bf16.msra.mxu0 0
    %444 = vmatprep.subr.bf16.mxu0 0
    %445 = vmatpush1.bf16.msra.mxu0 0
    %446 = vmatprep.subr.bf16.mxu0 0
    %447 = vmatpush1.bf16.msra.mxu0 0
    %448 = vmatprep.subr.bf16.mxu0 0
    %449 = vmatpush1.bf16.msra.mxu0 0
    %450 = vmatprep.subr.bf16.mxu0 0
    %451 = vmatpush1.bf16.msra.mxu0 0
    %452 = vmatprep.subr.bf16.mxu0 0
    %453 = vmatpush1.bf16.msra.mxu0 0
    %454 = vmatprep.subr.bf16.mxu0 0
    %455 = vmatpush1.bf16.msra.mxu0 0
    %456 = vmatprep.subr.bf16.mxu0 0
    %457 = vmatpush1.bf16.msra.mxu0 0
    %458 = vmatprep.subr.bf16.mxu0 0
    %459 = vmatpush1.bf16.msra.mxu0 0
    %460 = vmatprep.subr.bf16.mxu0 0
    %461 = vmatpush1.bf16.msra.mxu0 0
    %462 = vmatprep.subr.bf16.mxu0 0
    %463 = vmatpush1.bf16.msra.mxu0 0
    %464 = vmatprep.subr.bf16.mxu0 0
    %465 = vmatpush1.bf16.msra.mxu0 0
    %466 = vmatprep.subr.bf16.mxu0 0
    %467 = vmatpush1.bf16.msra.mxu0 0
    %468 = vmatprep.subr.bf16.mxu0 0
    %469 = vmatpush1.bf16.msra.mxu0 0
    %470 = vmatprep.mubr.bf16.mxu0 0
    %471 = vmatmul.mubr.bf16.gmra.mrb[0].mxu0 %v436
    %v472 = vpop.f32.mrb[0].mxu0
    %v473 = vadd.f32 %v421, %v472
    %v474 = vpop.f32.mrb[0].mxu0
    %v475 = vpop.f32.mrb[0].mxu0
    %v476 = vpop.f32.mrb[0].mxu0
    %477 = vdwg.mxu0
    %v478 = vmax.f32 %v473, 0.0
    %v479 = vadd.f32 %v478, %v338
    %v480 = vmax.f32 %v479, 0.0
    %s481 = scalar_lea.vmem [#allocation5], 96
    %v482 = vld [vmem:[%s481] sm:$0xf]
    %v483 = vld [vmem:[%s481 + $0x4] sm:$0xf]
    %v484 = vld [vmem:[%s481 + $0x8] sm:$0xf]
    %v485 = vld [vmem:[%s481 + $0xc] sm:$0xf]
    %v486 = vpack.c.bf16 %v480, %v480
    %s487 = scalar_lea.vmem [#allocation7], 6
    %v488 = vld [vmem:[%s487] sm:$0x1]
    %v490 = vlaneseq
    %v491 = vshrl.u32 %v490, 7
    %v492 = vsub.s32 0, %v491
    %v493 = vrot.slane %v488, %v492
    %v499 = vunpack.c.l.b16 %v482
    %v500 = vunpack.c.l.b16 %v483
    %v501 = vunpack.c.l.b16 %v484
    %v502 = vunpack.c.l.b16 %v485
    %v503 = vpack.c.b16 %v500, %v499
    %v504 = vpack.c.b16 %v502, %v501
    %v508 = vsel %vm80, %v486, 0
    %510 = vmatprep.subr.bf16.mxu0 0
    %511 = vmatpush1.bf16.msra.mxu0 %v503
    %512 = vmatprep.subr.bf16.mxu0 0
    %513 = vmatpush1.bf16.msra.mxu0 %v504
    %514 = vmatprep.subr.bf16.mxu0 0
    %515 = vmatpush1.bf16.msra.mxu0 0
    %516 = vmatprep.subr.bf16.mxu0 0
    %517 = vmatpush1.bf16.msra.mxu0 0
    %518 = vmatprep.subr.bf16.mxu0 0
    %519 = vmatpush1.bf16.msra.mxu0 0
    %520 = vmatprep.subr.bf16.mxu0 0
    %521 = vmatpush1.bf16.msra.mxu0 0
    %522 = vmatprep.subr.bf16.mxu0 0
    %523 = vmatpush1.bf16.msra.mxu0 0
    %524 = vmatprep.subr.bf16.mxu0 0
    %525 = vmatpush1.bf16.msra.mxu0 0
    %526 = vmatprep.subr.bf16.mxu0 0
    %527 = vmatpush1.bf16.msra.mxu0 0
    %528 = vmatprep.subr.bf16.mxu0 0
    %529 = vmatpush1.bf16.msra.mxu0 0
    %530 = vmatprep.subr.bf16.mxu0 0
    %531 = vmatpush1.bf16.msra.mxu0 0
    %532 = vmatprep.subr.bf16.mxu0 0
    %533 = vmatpush1.bf16.msra.mxu0 0
    %534 = vmatprep.subr.bf16.mxu0 0
    %535 = vmatpush1.bf16.msra.mxu0 0
    %536 = vmatprep.subr.bf16.mxu0 0
    %537 = vmatpush1.bf16.msra.mxu0 0
    %538 = vmatprep.subr.bf16.mxu0 0
    %539 = vmatpush1.bf16.msra.mxu0 0
    %540 = vmatprep.subr.bf16.mxu0 0
    %541 = vmatpush1.bf16.msra.mxu0 0
    %542 = vmatprep.mubr.bf16.mxu0 0
    %543 = vmatmul.mubr.bf16.gmra.mrb[0].mxu0 %v508
    %v544 = vpop.f32.mrb[0].mxu0
    %v545 = vadd.f32 %v493, %v544
    %v546 = vpop.f32.mrb[0].mxu0
    %v547 = vpop.f32.mrb[0].mxu0
    %v548 = vpop.f32.mrb[0].mxu0
    %549 = vdwg.mxu0
    %s550 = scalar_lea.vmem [#allocation5], 112
    %v551 = vld [vmem:[%s550] sm:$0xf]
    %s552 = scalar_lea.vmem [#allocation5], 128
    %v553 = vld [vmem:[%s552] sm:$0xf]
    %v554 = vld [vmem:[%s552 + $0x4] sm:$0xf]
    %v555 = vld [vmem:[%s552 + $0x8] sm:$0xf]
    %v556 = vld [vmem:[%s552 + $0xc] sm:$0xf]
    %s557 = scalar_lea.vmem [#allocation5], 144
    %v558 = vld [vmem:[%s557] sm:$0xf]
    %s559 = scalar_lea.vmem [#allocation5], 160
    %v560 = vld [vmem:[%s559] sm:$0xf]
    %v561 = vld [vmem:[%s559 + $0x4] sm:$0xf]
    %v562 = vld [vmem:[%s559 + $0x8] sm:$0xf]
    %v563 = vld [vmem:[%s559 + $0xc] sm:$0xf]
    %s564 = scalar_lea.vmem [#allocation5], 176
    %v565 = vld [vmem:[%s564] sm:$0xf]
    %s566 = scalar_lea.vmem [#allocation7], 7
    %v567 = vld [vmem:[%s566] sm:$0x1]
    %s568 = scalar_lea.vmem [#allocation7], 8
    %v569 = vld [vmem:[%s568] sm:$0x1]
    %s570 = scalar_lea.vmem [#allocation7], 9
    %v571 = vld [vmem:[%s570] sm:$0x1]
    %s572 = scalar_lea.vmem [#allocation7], 10
    %v573 = vld [vmem:[%s572] sm:$0x1]
    %s574 = scalar_lea.vmem [#allocation7], 11
    %v575 = vld [vmem:[%s574] sm:$0x1]
    %s576 = scalar_lea.vmem [#allocation7], 12
    %v577 = vld [vmem:[%s576] sm:$0x1]
    %s578 = scalar_lea.vmem [#allocation7], 13
    %v579 = vld [vmem:[%s578] sm:$0x1]
    %s580 = scalar_lea.vmem [#allocation7], 14
    %v581 = vld [vmem:[%s580] sm:$0x1]
    %s582 = scalar_lea.vmem [#allocation7], 15
    %v583 = vld [vmem:[%s582] sm:$0x1]
    %s584 = scalar_lea.vmem [#allocation7], 16
    %v585 = vld [vmem:[%s584] sm:$0x1]
    %s586 = scalar_lea.vmem [#allocation7], 17
    %v587 = vld [vmem:[%s586] sm:$0x1]
    %v588 = vpack.c.bf16 %v545, %v545
    %v590 = vlaneseq
    %v591 = vshrl.u32 %v590, 7
    %v592 = vsub.s32 0, %v591
    %v593 = vrot.slane %v567, %v592
    %vm595 = vcmask 64512
    %v597 = vsel %vm595, %v588, 0
    %vm599 = vcmask 1043456
    %v601 = vsel %vm599, %v551, 0
    %603 = vmatprep.subr.bf16.mxu0 0
    %604 = vmatpush1.bf16.msra.mxu0 %v601
    %605 = vmatprep.subr.bf16.mxu0 0
    %606 = vmatpush1.bf16.msra.mxu0 0
    %607 = vmatprep.subr.bf16.mxu0 0
    %608 = vmatpush1.bf16.msra.mxu0 0
    %609 = vmatprep.subr.bf16.mxu0 0
    %610 = vmatpush1.bf16.msra.mxu0 0
    %611 = vmatprep.subr.bf16.mxu0 0
    %612 = vmatpush1.bf16.msra.mxu0 0
    %613 = vmatprep.subr.bf16.mxu0 0
    %614 = vmatpush1.bf16.msra.mxu0 0
    %615 = vmatprep.subr.bf16.mxu0 0
    %616 = vmatpush1.bf16.msra.mxu0 0
    %617 = vmatprep.subr.bf16.mxu0 0
    %618 = vmatpush1.bf16.msra.mxu0 0
    %619 = vmatprep.subr.bf16.mxu0 0
    %620 = vmatpush1.bf16.msra.mxu0 0
    %621 = vmatprep.subr.bf16.mxu0 0
    %622 = vmatpush1.bf16.msra.mxu0 0
    %623 = vmatprep.subr.bf16.mxu0 0
    %624 = vmatpush1.bf16.msra.mxu0 0
    %625 = vmatprep.subr.bf16.mxu0 0
    %626 = vmatpush1.bf16.msra.mxu0 0
    %627 = vmatprep.subr.bf16.mxu0 0
    %628 = vmatpush1.bf16.msra.mxu0 0
    %629 = vmatprep.subr.bf16.mxu0 0
    %630 = vmatpush1.bf16.msra.mxu0 0
    %631 = vmatprep.subr.bf16.mxu0 0
    %632 = vmatpush1.bf16.msra.mxu0 0
    %633 = vmatprep.subr.bf16.mxu0 0
    %634 = vmatpush1.bf16.msra.mxu0 0
    %635 = vmatprep.mubr.bf16.mxu0 0
    %636 = vmatmul.mubr.bf16.gmra.mrb[0].mxu0 %v597
    %v637 = vpop.f32.mrb[0].mxu0
    %v638 = vadd.f32 %v593, %v637
    %v639 = vpop.f32.mrb[0].mxu0
    %v640 = vpop.f32.mrb[0].mxu0
    %v641 = vpop.f32.mrb[0].mxu0
    %642 = vdwg.mxu0
    %vm643 = vcmp.gt.f32.partialorder %v638, 0.0
    %v644 = vmin.f32 %v638, 0.0
    %v645 = vmul.f32 %v644, 1.442695
    %v646 = vpow.pop %v645
    %v647 = vsub.f32 %v646, 1.0
    %v648 = vmul.f32 %v647, 1.6732632
    %v649 = vsel %vm643, %v638, %v648
    %v650 = vmul.f32 %v649, 1.050701
    %vm651 = vcmask 254976
    %v652 = vsel %vm651, %v650, 0.0
    %653 = vadd.xlane.f32.xlu0 %v652
    %v654 = vpop.xlane.xlu0 %653
    %vm655 = vcmask 58368
    %v656 = vsel %vm655, %v545, 0.0
    %657 = vadd.xlane.f32.xlu0 %v656
    %v658 = vpop.xlane.xlu0 %657
    %v659 = vadd.f32 %v654, %v658
    %v660 = vrcp.pop 40.0
    %v661 = vmul.f32 %v659, %v660
    %v662 = vsub.f32 %v650, %v661
    %v663 = vsub.f32 %v545, %v661
    %v664 = vmul.f32 %v662, %v662
    %v665 = vsel %vm651, %v664, 0.0
    %666 = vadd.xlane.f32.xlu0 %v665
    %v667 = vpop.xlane.xlu0 %666
    %v668 = vmul.f32 %v663, %v663
    %v669 = vsel %vm655, %v668, 0.0
    %670 = vadd.xlane.f32.xlu0 %v669
    %v671 = vpop.xlane.xlu0 %670
    %v672 = vadd.f32 %v667, %v671
    %v673 = vmul.f32 %v672, %v660
    %v674 = vadd.f32 %v673, 1e-05
    %v675 = vrsqrt.pop %v674
    %v676 = vmul.f32 %v662, %v675
    %v678 = vlaneseq
    %v679 = vshrl.u32 %v678, 7
    %v680 = vsub.s32 0, %v679
    %v681 = vrot.slane %v573, %v680
    %v683 = vmul.f32 %v676, %v681
    %v685 = vlaneseq
    %v686 = vshrl.u32 %v685, 7
    %v687 = vsub.s32 0, %v686
    %v688 = vrot.slane %v577, %v687
    %v690 = vadd.f32 %v683, %v688
    %v691 = vmul.f32 %v663, %v675
    %v693 = vlaneseq
    %v694 = vshrl.u32 %v693, 7
    %v695 = vsub.s32 0, %v694
    %v696 = vrot.slane %v575, %v695
    %v698 = vmul.f32 %v691, %v696
    %v700 = vlaneseq
    %v701 = vshrl.u32 %v700, 7
    %v702 = vsub.s32 0, %v701
    %v703 = vrot.slane %v579, %v702
    %v705 = vadd.f32 %v698, %v703
    %v706 = vpack.c.bf16 %v690, %v690
    %v707 = vpack.c.bf16 %v705, %v705
    %v709 = vsel %vm595, %v707, 0
    %v712 = vsel %vm599, %v558, 0
    %714 = vmatprep.subr.bf16.mxu0 0
    %715 = vmatpush1.bf16.msra.mxu0 %v712
    %716 = vmatprep.subr.bf16.mxu0 0
    %717 = vmatpush1.bf16.msra.mxu0 0
    %718 = vmatprep.subr.bf16.mxu0 0
    %719 = vmatpush1.bf16.msra.mxu0 0
    %720 = vmatprep.subr.bf16.mxu0 0
    %721 = vmatpush1.bf16.msra.mxu0 0
    %722 = vmatprep.subr.bf16.mxu0 0
    %723 = vmatpush1.bf16.msra.mxu0 0
    %724 = vmatprep.subr.bf16.mxu0 0
    %725 = vmatpush1.bf16.msra.mxu0 0
    %726 = vmatprep.subr.bf16.mxu0 0
    %727 = vmatpush1.bf16.msra.mxu0 0
    %728 = vmatprep.subr.bf16.mxu0 0
    %729 = vmatpush1.bf16.msra.mxu0 0
    %730 = vmatprep.subr.bf16.mxu0 0
    %731 = vmatpush1.bf16.msra.mxu0 0
    %732 = vmatprep.subr.bf16.mxu0 0
    %733 = vmatpush1.bf16.msra.mxu0 0
    %734 = vmatprep.subr.bf16.mxu0 0
    %735 = vmatpush1.bf16.msra.mxu0 0
    %736 = vmatprep.subr.bf16.mxu0 0
    %737 = vmatpush1.bf16.msra.mxu0 0
    %738 = vmatprep.subr.bf16.mxu0 0
    %739 = vmatpush1.bf16.msra.mxu0 0
    %740 = vmatprep.subr.bf16.mxu0 0
    %741 = vmatpush1.bf16.msra.mxu0 0
    %742 = vmatprep.subr.bf16.mxu0 0
    %743 = vmatpush1.bf16.msra.mxu0 0
    %744 = vmatprep.subr.bf16.mxu0 0
    %745 = vmatpush1.bf16.msra.mxu0 0
    %746 = vmatprep.mubr.bf16.mxu0 0
    %747 = vmatmul.mubr.bf16.gmra.mrb[0].mxu0 %v709
    %v748 = vpop.f32.mrb[0].mxu0
    %v749 = vadd.f32 0.0, %v748
    %v750 = vpop.f32.mrb[0].mxu0
    %v751 = vpop.f32.mrb[0].mxu0
    %v752 = vpop.f32.mrb[0].mxu0
    %753 = vdwg.mxu0
    %v758 = vunpack.c.l.b16 %v553
    %v759 = vunpack.c.l.b16 %v554
    %v760 = vunpack.c.l.b16 %v555
    %v761 = vunpack.c.l.b16 %v556
    %v762 = vpack.c.b16 %v759, %v758
    %v763 = vpack.c.b16 %v761, %v760
    %v767 = vsel %vm80, %v706, 0
    %769 = vmatprep.subr.bf16.mxu0 0
    %770 = vmatpush1.bf16.msra.mxu0 %v762
    %771 = vmatprep.subr.bf16.mxu0 0
    %772 = vmatpush1.bf16.msra.mxu0 %v763
    %773 = vmatprep.subr.bf16.mxu0 0
    %774 = vmatpush1.bf16.msra.mxu0 0
    %775 = vmatprep.subr.bf16.mxu0 0
    %776 = vmatpush1.bf16.msra.mxu0 0
    %777 = vmatprep.subr.bf16.mxu0 0
    %778 = vmatpush1.bf16.msra.mxu0 0
    %779 = vmatprep.subr.bf16.mxu0 0
    %780 = vmatpush1.bf16.msra.mxu0 0
    %781 = vmatprep.subr.bf16.mxu0 0
    %782 = vmatpush1.bf16.msra.mxu0 0
    %783 = vmatprep.subr.bf16.mxu0 0
    %784 = vmatpush1.bf16.msra.mxu0 0
    %785 = vmatprep.subr.bf16.mxu0 0
    %786 = vmatpush1.bf16.msra.mxu0 0
    %787 = vmatprep.subr.bf16.mxu0 0
    %788 = vmatpush1.bf16.msra.mxu0 0
    %789 = vmatprep.subr.bf16.mxu0 0
    %790 = vmatpush1.bf16.msra.mxu0 0
    %791 = vmatprep.subr.bf16.mxu0 0
    %792 = vmatpush1.bf16.msra.mxu0 0
    %793 = vmatprep.subr.bf16.mxu0 0
    %794 = vmatpush1.bf16.msra.mxu0 0
    %795 = vmatprep.subr.bf16.mxu0 0
    %796 = vmatpush1.bf16.msra.mxu0 0
    %797 = vmatprep.subr.bf16.mxu0 0
    %798 = vmatpush1.bf16.msra.mxu0 0
    %799 = vmatprep.subr.bf16.mxu0 0
    %800 = vmatpush1.bf16.msra.mxu0 0
    %801 = vmatprep.mubr.bf16.mxu0 0
    %802 = vmatmul.mubr.bf16.gmra.mrb[0].mxu0 %v767
    %v803 = vpop.f32.mrb[0].mxu0
    %v804 = vadd.f32 %v749, %v803
    %v805 = vpop.f32.mrb[0].mxu0
    %v806 = vpop.f32.mrb[0].mxu0
    %v807 = vpop.f32.mrb[0].mxu0
    %808 = vdwg.mxu0
    %v810 = vlaneseq
    %v811 = vshrl.u32 %v810, 7
    %v812 = vsub.s32 0, %v811
    %v813 = vrot.slane %v569, %v812
    %v815 = vadd.f32 %v804, %v813
    %vm816 = vcmp.gt.f32.partialorder %v815, 0.0
    %v817 = vmin.f32 %v815, 0.0
    %v818 = vmul.f32 %v817, 1.442695
    %v819 = vpow.pop %v818
    %v820 = vsub.f32 %v819, 1.0
    %v821 = vmul.f32 %v820, 1.6732632
    %v822 = vsel %vm816, %v815, %v821
    %v823 = vmul.f32 %v822, 1.050701
    %v824 = vsel %vm651, %v823, 0.0
    %825 = vadd.xlane.f32.xlu0 %v824
    %v826 = vpop.xlane.xlu0 %825
    %v827 = vadd.f32 %v826, %v658
    %v828 = vmul.f32 %v827, %v660
    %v829 = vsub.f32 %v823, %v828
    %v830 = vsub.f32 %v545, %v828
    %v831 = vmul.f32 %v829, %v829
    %v832 = vsel %vm651, %v831, 0.0
    %833 = vadd.xlane.f32.xlu0 %v832
    %v834 = vpop.xlane.xlu0 %833
    %v835 = vmul.f32 %v830, %v830
    %v836 = vsel %vm655, %v835, 0.0
    %837 = vadd.xlane.f32.xlu0 %v836
    %v838 = vpop.xlane.xlu0 %837
    %v839 = vadd.f32 %v834, %v838
    %v840 = vmul.f32 %v839, %v660
    %v841 = vadd.f32 %v840, 1e-05
    %v842 = vrsqrt.pop %v841
    %v843 = vmul.f32 %v829, %v842
    %v845 = vlaneseq
    %v846 = vshrl.u32 %v845, 7
    %v847 = vsub.s32 0, %v846
    %v848 = vrot.slane %v581, %v847
    %v850 = vmul.f32 %v843, %v848
    %v852 = vlaneseq
    %v853 = vshrl.u32 %v852, 7
    %v854 = vsub.s32 0, %v853
    %v855 = vrot.slane %v585, %v854
    %v857 = vadd.f32 %v850, %v855
    %v858 = vmul.f32 %v830, %v842
    %v860 = vlaneseq
    %v861 = vshrl.u32 %v860, 7
    %v862 = vsub.s32 0, %v861
    %v863 = vrot.slane %v583, %v862
    %v865 = vmul.f32 %v858, %v863
    %v867 = vlaneseq
    %v868 = vshrl.u32 %v867, 7
    %v869 = vsub.s32 0, %v868
    %v870 = vrot.slane %v587, %v869
    %v872 = vadd.f32 %v865, %v870
    %v873 = vpack.c.bf16 %v857, %v857
    %v874 = vpack.c.bf16 %v872, %v872
    %v876 = vsel %vm595, %v874, 0
    %v879 = vsel %vm599, %v565, 0
    %881 = vmatprep.subr.bf16.mxu0 0
    %882 = vmatpush1.bf16.msra.mxu0 %v879
    %883 = vmatprep.subr.bf16.mxu0 0
    %884 = vmatpush1.bf16.msra.mxu0 0
    %885 = vmatprep.subr.bf16.mxu0 0
    %886 = vmatpush1.bf16.msra.mxu0 0
    %887 = vmatprep.subr.bf16.mxu0 0
    %888 = vmatpush1.bf16.msra.mxu0 0
    %889 = vmatprep.subr.bf16.mxu0 0
    %890 = vmatpush1.bf16.msra.mxu0 0
    %891 = vmatprep.subr.bf16.mxu0 0
    %892 = vmatpush1.bf16.msra.mxu0 0
    %893 = vmatprep.subr.bf16.mxu0 0
    %894 = vmatpush1.bf16.msra.mxu0 0
    %895 = vmatprep.subr.bf16.mxu0 0
    %896 = vmatpush1.bf16.msra.mxu0 0
    %897 = vmatprep.subr.bf16.mxu0 0
    %898 = vmatpush1.bf16.msra.mxu0 0
    %899 = vmatprep.subr.bf16.mxu0 0
    %900 = vmatpush1.bf16.msra.mxu0 0
    %901 = vmatprep.subr.bf16.mxu0 0
    %902 = vmatpush1.bf16.msra.mxu0 0
    %903 = vmatprep.subr.bf16.mxu0 0
    %904 = vmatpush1.bf16.msra.mxu0 0
    %905 = vmatprep.subr.bf16.mxu0 0
    %906 = vmatpush1.bf16.msra.mxu0 0
    %907 = vmatprep.subr.bf16.mxu0 0
    %908 = vmatpush1.bf16.msra.mxu0 0
    %909 = vmatprep.subr.bf16.mxu0 0
    %910 = vmatpush1.bf16.msra.mxu0 0
    %911 = vmatprep.subr.bf16.mxu0 0
    %912 = vmatpush1.bf16.msra.mxu0 0
    %913 = vmatprep.mubr.bf16.mxu0 0
    %914 = vmatmul.mubr.bf16.gmra.mrb[0].mxu0 %v876
    %v915 = vpop.f32.mrb[0].mxu0
    %v916 = vadd.f32 0.0, %v915
    %v917 = vpop.f32.mrb[0].mxu0
    %v918 = vpop.f32.mrb[0].mxu0
    %v919 = vpop.f32.mrb[0].mxu0
    %920 = vdwg.mxu0
    %v925 = vunpack.c.l.b16 %v560
    %v926 = vunpack.c.l.b16 %v561
    %v927 = vunpack.c.l.b16 %v562
    %v928 = vunpack.c.l.b16 %v563
    %v929 = vpack.c.b16 %v926, %v925
    %v930 = vpack.c.b16 %v928, %v927
    %v934 = vsel %vm80, %v873, 0
    %936 = vmatprep.subr.bf16.mxu0 0
    %937 = vmatpush1.bf16.msra.mxu0 %v929
    %938 = vmatprep.subr.bf16.mxu0 0
    %939 = vmatpush1.bf16.msra.mxu0 %v930
    %940 = vmatprep.subr.bf16.mxu0 0
    %941 = vmatpush1.bf16.msra.mxu0 0
    %942 = vmatprep.subr.bf16.mxu0 0
    %943 = vmatpush1.bf16.msra.mxu0 0
    %944 = vmatprep.subr.bf16.mxu0 0
    %945 = vmatpush1.bf16.msra.mxu0 0
    %946 = vmatprep.subr.bf16.mxu0 0
    %947 = vmatpush1.bf16.msra.mxu0 0
    %948 = vmatprep.subr.bf16.mxu0 0
    %949 = vmatpush1.bf16.msra.mxu0 0
    %950 = vmatprep.subr.bf16.mxu0 0
    %951 = vmatpush1.bf16.msra.mxu0 0
    %952 = vmatprep.subr.bf16.mxu0 0
    %953 = vmatpush1.bf16.msra.mxu0 0
    %954 = vmatprep.subr.bf16.mxu0 0
    %955 = vmatpush1.bf16.msra.mxu0 0
    %956 = vmatprep.subr.bf16.mxu0 0
    %957 = vmatpush1.bf16.msra.mxu0 0
    %958 = vmatprep.subr.bf16.mxu0 0
    %959 = vmatpush1.bf16.msra.mxu0 0
    %960 = vmatprep.subr.bf16.mxu0 0
    %961 = vmatpush1.bf16.msra.mxu0 0
    %962 = vmatprep.subr.bf16.mxu0 0
    %963 = vmatpush1.bf16.msra.mxu0 0
    %964 = vmatprep.subr.bf16.mxu0 0
    %965 = vmatpush1.bf16.msra.mxu0 0
    %966 = vmatprep.subr.bf16.mxu0 0
    %967 = vmatpush1.bf16.msra.mxu0 0
    %968 = vmatprep.mubr.bf16.mxu0 0
    %969 = vmatmul.mubr.bf16.gmra.mrb[0].mxu0 %v934
    %v970 = vpop.f32.mrb[0].mxu0
    %v971 = vadd.f32 %v916, %v970
    %v972 = vpop.f32.mrb[0].mxu0
    %v973 = vpop.f32.mrb[0].mxu0
    %v974 = vpop.f32.mrb[0].mxu0
    %975 = vdwg.mxu0
    %v977 = vlaneseq
    %v978 = vshrl.u32 %v977, 7
    %v979 = vsub.s32 0, %v978
    %v980 = vrot.slane %v571, %v979
    %v982 = vadd.f32 %v971, %v980
    %983 = vst.msk [vmem:[#allocation8] sm:$0x3] %vm655, %v982
    // Predicated region
    $region26: #{tpu_custom_call.1} parent=1 // pred_check
      _
    $region27: #{tpu_custom_call.1} parent=1 // pred_check_branch
      %985 = sbr.rel (0) target = $region29
    $region28: #{tpu_custom_call.1} parent=1 // pred_region
      %s987 = ssub.s32 32, 32
      %988 = vsyncadd [#allocation4], %s987
      %s990 = sshll.u32 [#allocation8], 4
      %s991 = int_to_ptr.vmem [resolvable:$true] %s990
      %993 = dma.vmem_to_hbm [thread:$0]  %s991, 32, %s3, [#allocation4]
    $region29: #{tpu_custom_call.1} parent=1 // pred_fallthru
      _
    // Predicated region
    $region30: #{tpu_custom_call.1} parent=1 // pred_check
      _
    $region31: #{tpu_custom_call.1} parent=1 // pred_check_branch
      %995 = sbr.rel (0) target = $region33
    $region32: #{tpu_custom_call.1} parent=1 // pred_region
      %996 = dma.done [#allocation4], 32
    $region33: #{tpu_custom_call.1} parent=1 // pred_fallthru
      _
    %997 = vsyncpa [#allocation3], 1
    %998 = vsyncpa [#allocation6], 1
    %999 = vsyncpa [#allocation4], 1

</llo_original>
